<compile_context>
chip_gen: v7x
topology: tpu7x:2x2x1
jax: 0.10.0
libtpu: 0.0.40
codegen_flags: <defaults>
</compile_context>

<pallas_src>
import functools

import jax
import jax.numpy as jnp
from jax.experimental import pallas as pl
from jax.experimental.pallas import tpu as pltpu


def _rational_A(x, num_ref, den_ref):
    """Rational activation, version A, degrees (5, 4). Coeffs read from SMEM."""
    # P(x) = a0 + a1 x + ... + a5 x^5   (Horner)
    p = num_ref[5]
    for i in range(4, -1, -1):
        p = p * x + num_ref[i]
    # Q(x) = 1 + | b1 x + b2 x^2 + b3 x^3 + b4 x^4 |
    q = den_ref[3]
    for i in range(2, -1, -1):
        q = q * x + den_ref[i]
    q = 1.0 + jnp.abs(q * x)
    # Approx reciprocal runs on the EUP slot (otherwise idle here).
    return p * pl.reciprocal(q, approx=True)


def _fused_block_kernel(x_ref, w1_ref, b1_ref, w2_ref, b2_ref,
                        rnum_ref, rden_ref, out_ref, *, H, W):
    """Whole RationalBasicBlock for one image in lane-dense (C, H*W) layout."""
    S = H * W
    cout = out_ref.shape[1]

    x = x_ref[0]            # (Cin, S)  f32
    b1 = b1_ref[...]        # (Cout, 1)
    b2 = b2_ref[...]        # (Cout, 1)

    # ---- border masks on the flattened spatial axis (computed once, shared
    # ---- by both convolutions).  Avoids integer div/mod (float floor trick).
    idx = jax.lax.broadcasted_iota(jnp.int32, (1, S), 1)
    idx_f = idx.astype(jnp.float32)
    row_f = jnp.floor((idx_f + 0.5) * (1.0 / W))
    col_f = idx_f - row_f * W
    not_left = col_f > 0.5            # col != 0
    not_right = col_f < (W - 1.5)     # col != W-1
    not_top = idx >= W                # row != 0
    not_bot = idx < (S - W)           # row != H-1

    # 9 taps, tap index t = (dy+1)*3 + (dx+1): (lane shift, border mask)
    taps = []
    for dy in (-1, 0, 1):
        for dx in (-1, 0, 1):
            m = None
            if dy == -1:
                m = not_top
            elif dy == 1:
                m = not_bot
            if dx == -1:
                m = not_left if m is None else (m & not_left)
            elif dx == 1:
                m = not_right if m is None else (m & not_right)
            taps.append(((-(dy * W + dx)) % S, m))

    def conv3x3(inp, w_ref, bias):
        """3x3 conv, stride=1, pad=1, on (Cin, S); BN scale folded in w."""
        acc = jnp.zeros((cout, S), jnp.float32)
        for t, (shift, mask) in enumerate(taps):
            tap = inp if shift == 0 else pltpu.roll(inp, shift, 1)
            if mask is not None:
                tap = jnp.where(mask, tap, 0.0)
            # Cin contraction vectorized per tap: (Cout, Cin) @ (Cin, S).
            acc = acc + jnp.dot(w_ref[t], tap,
                                preferred_element_type=jnp.float32)
        return acc + bias

    h = conv3x3(x, w1_ref, b1)                 # conv1 + bn1 (scale folded)
    h = _rational_A(h, rnum_ref, rden_ref)     # rational
    h = conv3x3(h, w2_ref, b2)                 # conv2 + bn2 (scale folded)
    h = h + x                                  # += identity (stride=1 path)
    out = _rational_A(h, rnum_ref, rden_ref)   # rational
    out_ref[...] = out[None]


def _fold_bn(gamma, beta, mean, var, eps=1e-5):
    scale = gamma / jnp.sqrt(var + eps)
    bias = beta - mean * scale
    return scale, bias


def _oihw_to_taps(w_oihw):
    """PyTorch (O, I, 3, 3) -> (9, O, I), tap index = ky*3 + kx."""
    o, i, kh, kw = w_oihw.shape
    return jnp.transpose(w_oihw, (2, 3, 0, 1)).reshape(kh * kw, o, i)


@jax.jit
def rational_basic_block_forward(x_nchw, params):
    """Forward pass of RationalBasicBlock (eval-mode BN). NCHW in / NCHW out."""
    n, c, h, w = x_nchw.shape
    s = h * w
    x = x_nchw.reshape(n, c, s).astype(jnp.float32)   # free reshape, no transpose

    s1, b1 = _fold_bn(params["bn1_gamma"], params["bn1_beta"],
                      params["bn1_mean"], params["bn1_var"])
    s2, b2 = _fold_bn(params["bn2_gamma"], params["bn2_beta"],
                      params["bn2_mean"], params["bn2_var"])

    # Fold BN scale into conv weights: bn(conv(x, W)) == conv(x, s*W) + b.
    w1 = _oihw_to_taps(params["w1"]).astype(jnp.float32) * s1[None, :, None]
    w2 = _oihw_to_taps(params["w2"]).astype(jnp.float32) * s2[None, :, None]
    cout = w1.shape[1]

    kernel = functools.partial(_fused_block_kernel, H=h, W=w)
    out = pl.pallas_call(
        kernel,
        out_shape=jax.ShapeDtypeStruct((n, cout, s), jnp.float32),
        grid=(n,),
        in_specs=[
            pl.BlockSpec((1, c, s), lambda i: (i, 0, 0)),
            pl.BlockSpec((9, cout, c), lambda i: (0, 0, 0)),
            pl.BlockSpec((cout, 1), lambda i: (0, 0)),
            pl.BlockSpec((9, cout, cout), lambda i: (0, 0, 0)),
            pl.BlockSpec((cout, 1), lambda i: (0, 0)),
            pl.BlockSpec((6,), lambda i: (0,),
                         memory_space=pltpu.MemorySpace.SMEM),
            pl.BlockSpec((4,), lambda i: (0,),
                         memory_space=pltpu.MemorySpace.SMEM),
        ],
        out_specs=pl.BlockSpec((1, cout, s), lambda i: (i, 0, 0)),
        compiler_params=pltpu.CompilerParams(
            dimension_semantics=("parallel",)),
    )(x,
      w1,
      b1.reshape(cout, 1).astype(jnp.float32),
      w2,
      b2.reshape(cout, 1).astype(jnp.float32),
      params["rat_num"].astype(jnp.float32),
      params["rat_den"].astype(jnp.float32))

    return out.reshape(n, cout, h, w)


if __name__ == "__main__":
    key = jax.random.PRNGKey(0)
    N, C, H, W = 2, 4, 16, 16   # inplanes = planes = 4, stride = 1
    planes = 4
    ks = jax.random.split(key, 12)

    x = jax.random.normal(ks[0], (N, C, H, W), jnp.float32)

    params = dict(
        w1=0.1 * jax.random.normal(ks[1], (planes, C, 3, 3), jnp.float32),
        w2=0.1 * jax.random.normal(ks[2], (planes, planes, 3, 3), jnp.float32),
        bn1_gamma=1.0 + 0.1 * jax.random.normal(ks[3], (planes,), jnp.float32),
        bn1_beta=0.1 * jax.random.normal(ks[4], (planes,), jnp.float32),
        bn1_mean=0.05 * jax.random.normal(ks[5], (planes,), jnp.float32),
        bn1_var=1.0 + 0.1 * jnp.abs(jax.random.normal(ks[6], (planes,),
                                                      jnp.float32)),
        bn2_gamma=1.0 + 0.1 * jax.random.normal(ks[7], (planes,), jnp.float32),
        bn2_beta=0.1 * jax.random.normal(ks[8], (planes,), jnp.float32),
        bn2_mean=0.05 * jax.random.normal(ks[9], (planes,), jnp.float32),
        bn2_var=1.0 + 0.1 * jnp.abs(jax.random.normal(ks[10], (planes,),
                                                      jnp.float32)),
        # Deterministic degree-(5,4) version-A rational coefficients
        # (LeakyReLU-like Pade approximant).
        rat_num=jnp.array([0.0299, 0.6169, 2.3754, 3.0661, 1.5247, 0.2528],
                          jnp.float32),
        rat_den=jnp.array([1.1916, 4.4081, 0.9111, 0.3489], jnp.float32),
    )

    out = rational_basic_block_forward(x, params)
    out = jax.block_until_ready(out)
    assert out.shape == (N, planes, H, W), out.shape
    assert bool(jnp.all(jnp.isfinite(out)))
    print("KERNEL_OK")
</pallas_src>

<mosaic_0001>
module attributes {stable_mosaic.version = 11 : i64} {
  func.func @_fused_block_kernel(%arg0: i32, %arg1: memref<1x4x256xf32, #tpu.memory_space<vmem>>, %arg2: memref<9x4x4xf32, #tpu.memory_space<vmem>>, %arg3: memref<4x1xf32, #tpu.memory_space<vmem>>, %arg4: memref<9x4x4xf32, #tpu.memory_space<vmem>>, %arg5: memref<4x1xf32, #tpu.memory_space<vmem>>, %arg6: memref<6xf32, #tpu.memory_space<smem>>, %arg7: memref<4xf32, #tpu.memory_space<smem>>, %arg8: memref<1x4x256xf32, #tpu.memory_space<vmem>>) attributes {dimension_semantics = [#tpu.dimension_semantics<parallel>], iteration_bounds = array<i64: 2>, scalar_prefetch = 0 : i64, scratch_operands = 0 : i64, tpu.core_type = #tpu.core_type<tc>, window_params = [{transform_indices = @transform_0, window_bounds = array<i64: 1, 4, 256>}, {pipeline_mode = #tpu.pipeline_mode<synchronous>, transform_indices = @transform_1, window_bounds = array<i64: 9, 4, 4>}, {pipeline_mode = #tpu.pipeline_mode<synchronous>, transform_indices = @transform_2, window_bounds = array<i64: 4, 1>}, {pipeline_mode = #tpu.pipeline_mode<synchronous>, transform_indices = @transform_3, window_bounds = array<i64: 9, 4, 4>}, {pipeline_mode = #tpu.pipeline_mode<synchronous>, transform_indices = @transform_4, window_bounds = array<i64: 4, 1>}, {transform_indices = @transform_5, window_bounds = array<i64: 6>}, {transform_indices = @transform_6, window_bounds = array<i64: 4>}, {transform_indices = @transform_7, window_bounds = array<i64: 1, 4, 256>}]} {
    %c0 = arith.constant 0 : index
    %c0_0 = arith.constant 0 : index
    %c0_1 = arith.constant 0 : index
    %0 = vector.load %arg1[%c0, %c0_0, %c0_1] : memref<1x4x256xf32, #tpu.memory_space<vmem>>, vector<1x4x256xf32>
    %1 = vector.shape_cast %0 : vector<1x4x256xf32> to vector<4x256xf32>
    %c0_2 = arith.constant 0 : index
    %c0_3 = arith.constant 0 : index
    %2 = vector.load %arg3[%c0_2, %c0_3] : memref<4x1xf32, #tpu.memory_space<vmem>>, vector<4x1xf32>
    %c0_4 = arith.constant 0 : index
    %c0_5 = arith.constant 0 : index
    %3 = vector.load %arg5[%c0_4, %c0_5] : memref<4x1xf32, #tpu.memory_space<vmem>>, vector<4x1xf32>
    %4 = tpu.iota {dimensions = array<i32: 1>} : vector<1x256xi32>
    %5 = arith.sitofp %4 : vector<1x256xi32> to vector<1x256xf32>
    %cst = arith.constant 5.000000e-01 : f32
    %6 = vector.broadcast %cst : f32 to vector<1x256xf32>
    %7 = arith.addf %5, %6 : vector<1x256xf32>
    %cst_6 = arith.constant 6.250000e-02 : f32
    %8 = vector.broadcast %cst_6 : f32 to vector<1x256xf32>
    %9 = arith.mulf %7, %8 : vector<1x256xf32>
    %10 = math.floor %9 : vector<1x256xf32>
    %cst_7 = arith.constant 1.600000e+01 : f32
    %11 = vector.broadcast %cst_7 : f32 to vector<1x256xf32>
    %12 = arith.mulf %10, %11 : vector<1x256xf32>
    %13 = arith.subf %5, %12 : vector<1x256xf32>
    %cst_8 = arith.constant 5.000000e-01 : f32
    %14 = vector.broadcast %cst_8 : f32 to vector<1x256xf32>
    %15 = arith.cmpf ogt, %13, %14 : vector<1x256xf32>
    %cst_9 = arith.constant 1.450000e+01 : f32
    %16 = vector.broadcast %cst_9 : f32 to vector<1x256xf32>
    %17 = arith.cmpf olt, %13, %16 : vector<1x256xf32>
    %c16_i32 = arith.constant 16 : i32
    %18 = vector.broadcast %c16_i32 : i32 to vector<1x256xi32>
    %19 = arith.cmpi sge, %4, %18 : vector<1x256xi32>
    %c240_i32 = arith.constant 240 : i32
    %20 = vector.broadcast %c240_i32 : i32 to vector<1x256xi32>
    %21 = arith.cmpi slt, %4, %20 : vector<1x256xi32>
    %22 = arith.andi %19, %15 : vector<1x256xi1>
    %23 = arith.andi %19, %17 : vector<1x256xi1>
    %24 = arith.andi %21, %15 : vector<1x256xi1>
    %25 = arith.andi %21, %17 : vector<1x256xi1>
    %cst_10 = arith.constant 0.000000e+00 : f32
    %26 = vector.broadcast %cst_10 : f32 to vector<4x256xf32>
    %c17_i32 = arith.constant 17 : i32
    %27 = tpu.dynamic_rotate %1 by %c17_i32 dim 1 : vector<4x256xf32>, i32 -> vector<4x256xf32>
    %cst_11 = arith.constant 0.000000e+00 : f32
    %28 = vector.shape_cast %22 : vector<1x256xi1> to vector<1x256xi1>
    %29 = vector.broadcast %28 : vector<1x256xi1> to vector<4x256xi1>
    %30 = vector.broadcast %cst_11 : f32 to vector<4x256xf32>
    %31 = arith.select %29, %27, %30 : vector<4x256xi1>, vector<4x256xf32>
    %c0_12 = arith.constant 0 : index
    %c0_13 = arith.constant 0 : index
    %c0_14 = arith.constant 0 : index
    %32 = vector.load %arg2[%c0_12, %c0_13, %c0_14] : memref<9x4x4xf32, #tpu.memory_space<vmem>>, vector<1x4x4xf32>
    %33 = vector.shape_cast %32 : vector<1x4x4xf32> to vector<4x4xf32>
    %cst_15 = arith.constant dense<0.000000e+00> : vector<4x256xf32>
    %34 = tpu.matmul %33, %31, %cst_15 {dimension_numbers = #tpu.dot_dimension_numbers<[1], [0], [0], [1], [0, 0, 1, 1], [], []>} : vector<4x4xf32>, vector<4x256xf32>, vector<4x256xf32> -> vector<4x256xf32>
    %35 = arith.addf %26, %34 : vector<4x256xf32>
    %c16_i32_16 = arith.constant 16 : i32
    %36 = tpu.dynamic_rotate %1 by %c16_i32_16 dim 1 : vector<4x256xf32>, i32 -> vector<4x256xf32>
    %cst_17 = arith.constant 0.000000e+00 : f32
    %37 = vector.shape_cast %19 : vector<1x256xi1> to vector<1x256xi1>
    %38 = vector.broadcast %37 : vector<1x256xi1> to vector<4x256xi1>
    %39 = vector.broadcast %cst_17 : f32 to vector<4x256xf32>
    %40 = arith.select %38, %36, %39 : vector<4x256xi1>, vector<4x256xf32>
    %c1 = arith.constant 1 : index
    %c0_18 = arith.constant 0 : index
    %c0_19 = arith.constant 0 : index
    %41 = vector.load %arg2[%c1, %c0_18, %c0_19] : memref<9x4x4xf32, #tpu.memory_space<vmem>>, vector<1x4x4xf32>
    %42 = vector.shape_cast %41 : vector<1x4x4xf32> to vector<4x4xf32>
    %cst_20 = arith.constant dense<0.000000e+00> : vector<4x256xf32>
    %43 = tpu.matmul %42, %40, %cst_20 {dimension_numbers = #tpu.dot_dimension_numbers<[1], [0], [0], [1], [0, 0, 1, 1], [], []>} : vector<4x4xf32>, vector<4x256xf32>, vector<4x256xf32> -> vector<4x256xf32>
    %44 = arith.addf %35, %43 : vector<4x256xf32>
    %c15_i32 = arith.constant 15 : i32
    %45 = tpu.dynamic_rotate %1 by %c15_i32 dim 1 : vector<4x256xf32>, i32 -> vector<4x256xf32>
    %cst_21 = arith.constant 0.000000e+00 : f32
    %46 = vector.shape_cast %23 : vector<1x256xi1> to vector<1x256xi1>
    %47 = vector.broadcast %46 : vector<1x256xi1> to vector<4x256xi1>
    %48 = vector.broadcast %cst_21 : f32 to vector<4x256xf32>
    %49 = arith.select %47, %45, %48 : vector<4x256xi1>, vector<4x256xf32>
    %c2 = arith.constant 2 : index
    %c0_22 = arith.constant 0 : index
    %c0_23 = arith.constant 0 : index
    %50 = vector.load %arg2[%c2, %c0_22, %c0_23] : memref<9x4x4xf32, #tpu.memory_space<vmem>>, vector<1x4x4xf32>
    %51 = vector.shape_cast %50 : vector<1x4x4xf32> to vector<4x4xf32>
    %cst_24 = arith.constant dense<0.000000e+00> : vector<4x256xf32>
    %52 = tpu.matmul %51, %49, %cst_24 {dimension_numbers = #tpu.dot_dimension_numbers<[1], [0], [0], [1], [0, 0, 1, 1], [], []>} : vector<4x4xf32>, vector<4x256xf32>, vector<4x256xf32> -> vector<4x256xf32>
    %53 = arith.addf %44, %52 : vector<4x256xf32>
    %c1_i32 = arith.constant 1 : i32
    %54 = tpu.dynamic_rotate %1 by %c1_i32 dim 1 : vector<4x256xf32>, i32 -> vector<4x256xf32>
    %cst_25 = arith.constant 0.000000e+00 : f32
    %55 = vector.shape_cast %15 : vector<1x256xi1> to vector<1x256xi1>
    %56 = vector.broadcast %55 : vector<1x256xi1> to vector<4x256xi1>
    %57 = vector.broadcast %cst_25 : f32 to vector<4x256xf32>
    %58 = arith.select %56, %54, %57 : vector<4x256xi1>, vector<4x256xf32>
    %c3 = arith.constant 3 : index
    %c0_26 = arith.constant 0 : index
    %c0_27 = arith.constant 0 : index
    %59 = vector.load %arg2[%c3, %c0_26, %c0_27] : memref<9x4x4xf32, #tpu.memory_space<vmem>>, vector<1x4x4xf32>
    %60 = vector.shape_cast %59 : vector<1x4x4xf32> to vector<4x4xf32>
    %cst_28 = arith.constant dense<0.000000e+00> : vector<4x256xf32>
    %61 = tpu.matmul %60, %58, %cst_28 {dimension_numbers = #tpu.dot_dimension_numbers<[1], [0], [0], [1], [0, 0, 1, 1], [], []>} : vector<4x4xf32>, vector<4x256xf32>, vector<4x256xf32> -> vector<4x256xf32>
    %62 = arith.addf %53, %61 : vector<4x256xf32>
    %c4 = arith.constant 4 : index
    %c0_29 = arith.constant 0 : index
    %c0_30 = arith.constant 0 : index
    %63 = vector.load %arg2[%c4, %c0_29, %c0_30] : memref<9x4x4xf32, #tpu.memory_space<vmem>>, vector<1x4x4xf32>
    %64 = vector.shape_cast %63 : vector<1x4x4xf32> to vector<4x4xf32>
    %cst_31 = arith.constant dense<0.000000e+00> : vector<4x256xf32>
    %65 = tpu.matmul %64, %1, %cst_31 {dimension_numbers = #tpu.dot_dimension_numbers<[1], [0], [0], [1], [0, 0, 1, 1], [], []>} : vector<4x4xf32>, vector<4x256xf32>, vector<4x256xf32> -> vector<4x256xf32>
    %66 = arith.addf %62, %65 : vector<4x256xf32>
    %c255_i32 = arith.constant 255 : i32
    %67 = tpu.dynamic_rotate %1 by %c255_i32 dim 1 : vector<4x256xf32>, i32 -> vector<4x256xf32>
    %cst_32 = arith.constant 0.000000e+00 : f32
    %68 = vector.shape_cast %17 : vector<1x256xi1> to vector<1x256xi1>
    %69 = vector.broadcast %68 : vector<1x256xi1> to vector<4x256xi1>
    %70 = vector.broadcast %cst_32 : f32 to vector<4x256xf32>
    %71 = arith.select %69, %67, %70 : vector<4x256xi1>, vector<4x256xf32>
    %c5 = arith.constant 5 : index
    %c0_33 = arith.constant 0 : index
    %c0_34 = arith.constant 0 : index
    %72 = vector.load %arg2[%c5, %c0_33, %c0_34] : memref<9x4x4xf32, #tpu.memory_space<vmem>>, vector<1x4x4xf32>
    %73 = vector.shape_cast %72 : vector<1x4x4xf32> to vector<4x4xf32>
    %cst_35 = arith.constant dense<0.000000e+00> : vector<4x256xf32>
    %74 = tpu.matmul %73, %71, %cst_35 {dimension_numbers = #tpu.dot_dimension_numbers<[1], [0], [0], [1], [0, 0, 1, 1], [], []>} : vector<4x4xf32>, vector<4x256xf32>, vector<4x256xf32> -> vector<4x256xf32>
    %75 = arith.addf %66, %74 : vector<4x256xf32>
    %c241_i32 = arith.constant 241 : i32
    %76 = tpu.dynamic_rotate %1 by %c241_i32 dim 1 : vector<4x256xf32>, i32 -> vector<4x256xf32>
    %cst_36 = arith.constant 0.000000e+00 : f32
    %77 = vector.shape_cast %24 : vector<1x256xi1> to vector<1x256xi1>
    %78 = vector.broadcast %77 : vector<1x256xi1> to vector<4x256xi1>
    %79 = vector.broadcast %cst_36 : f32 to vector<4x256xf32>
    %80 = arith.select %78, %76, %79 : vector<4x256xi1>, vector<4x256xf32>
    %c6 = arith.constant 6 : index
    %c0_37 = arith.constant 0 : index
    %c0_38 = arith.constant 0 : index
    %81 = vector.load %arg2[%c6, %c0_37, %c0_38] : memref<9x4x4xf32, #tpu.memory_space<vmem>>, vector<1x4x4xf32>
    %82 = vector.shape_cast %81 : vector<1x4x4xf32> to vector<4x4xf32>
    %cst_39 = arith.constant dense<0.000000e+00> : vector<4x256xf32>
    %83 = tpu.matmul %82, %80, %cst_39 {dimension_numbers = #tpu.dot_dimension_numbers<[1], [0], [0], [1], [0, 0, 1, 1], [], []>} : vector<4x4xf32>, vector<4x256xf32>, vector<4x256xf32> -> vector<4x256xf32>
    %84 = arith.addf %75, %83 : vector<4x256xf32>
    %c240_i32_40 = arith.constant 240 : i32
    %85 = tpu.dynamic_rotate %1 by %c240_i32_40 dim 1 : vector<4x256xf32>, i32 -> vector<4x256xf32>
    %cst_41 = arith.constant 0.000000e+00 : f32
    %86 = vector.shape_cast %21 : vector<1x256xi1> to vector<1x256xi1>
    %87 = vector.broadcast %86 : vector<1x256xi1> to vector<4x256xi1>
    %88 = vector.broadcast %cst_41 : f32 to vector<4x256xf32>
    %89 = arith.select %87, %85, %88 : vector<4x256xi1>, vector<4x256xf32>
    %c7 = arith.constant 7 : index
    %c0_42 = arith.constant 0 : index
    %c0_43 = arith.constant 0 : index
    %90 = vector.load %arg2[%c7, %c0_42, %c0_43] : memref<9x4x4xf32, #tpu.memory_space<vmem>>, vector<1x4x4xf32>
    %91 = vector.shape_cast %90 : vector<1x4x4xf32> to vector<4x4xf32>
    %cst_44 = arith.constant dense<0.000000e+00> : vector<4x256xf32>
    %92 = tpu.matmul %91, %89, %cst_44 {dimension_numbers = #tpu.dot_dimension_numbers<[1], [0], [0], [1], [0, 0, 1, 1], [], []>} : vector<4x4xf32>, vector<4x256xf32>, vector<4x256xf32> -> vector<4x256xf32>
    %93 = arith.addf %84, %92 : vector<4x256xf32>
    %c239_i32 = arith.constant 239 : i32
    %94 = tpu.dynamic_rotate %1 by %c239_i32 dim 1 : vector<4x256xf32>, i32 -> vector<4x256xf32>
    %cst_45 = arith.constant 0.000000e+00 : f32
    %95 = vector.shape_cast %25 : vector<1x256xi1> to vector<1x256xi1>
    %96 = vector.broadcast %95 : vector<1x256xi1> to vector<4x256xi1>
    %97 = vector.broadcast %cst_45 : f32 to vector<4x256xf32>
    %98 = arith.select %96, %94, %97 : vector<4x256xi1>, vector<4x256xf32>
    %c8 = arith.constant 8 : index
    %c0_46 = arith.constant 0 : index
    %c0_47 = arith.constant 0 : index
    %99 = vector.load %arg2[%c8, %c0_46, %c0_47] : memref<9x4x4xf32, #tpu.memory_space<vmem>>, vector<1x4x4xf32>
    %100 = vector.shape_cast %99 : vector<1x4x4xf32> to vector<4x4xf32>
    %cst_48 = arith.constant dense<0.000000e+00> : vector<4x256xf32>
    %101 = tpu.matmul %100, %98, %cst_48 {dimension_numbers = #tpu.dot_dimension_numbers<[1], [0], [0], [1], [0, 0, 1, 1], [], []>} : vector<4x4xf32>, vector<4x256xf32>, vector<4x256xf32> -> vector<4x256xf32>
    %102 = arith.addf %93, %101 : vector<4x256xf32>
    %103 = vector.broadcast %2 : vector<4x1xf32> to vector<4x256xf32>
    %104 = arith.addf %102, %103 : vector<4x256xf32>
    %c5_49 = arith.constant 5 : index
    %105 = memref.load %arg6[%c5_49] : memref<6xf32, #tpu.memory_space<smem>>
    %106 = vector.broadcast %105 : f32 to vector<4x256xf32>
    %107 = arith.mulf %106, %104 : vector<4x256xf32>
    %c4_50 = arith.constant 4 : index
    %108 = memref.load %arg6[%c4_50] : memref<6xf32, #tpu.memory_space<smem>>
    %109 = vector.broadcast %108 : f32 to vector<4x256xf32>
    %110 = arith.addf %107, %109 : vector<4x256xf32>
    %111 = arith.mulf %110, %104 : vector<4x256xf32>
    %c3_51 = arith.constant 3 : index
    %112 = memref.load %arg6[%c3_51] : memref<6xf32, #tpu.memory_space<smem>>
    %113 = vector.broadcast %112 : f32 to vector<4x256xf32>
    %114 = arith.addf %111, %113 : vector<4x256xf32>
    %115 = arith.mulf %114, %104 : vector<4x256xf32>
    %c2_52 = arith.constant 2 : index
    %116 = memref.load %arg6[%c2_52] : memref<6xf32, #tpu.memory_space<smem>>
    %117 = vector.broadcast %116 : f32 to vector<4x256xf32>
    %118 = arith.addf %115, %117 : vector<4x256xf32>
    %119 = arith.mulf %118, %104 : vector<4x256xf32>
    %c1_53 = arith.constant 1 : index
    %120 = memref.load %arg6[%c1_53] : memref<6xf32, #tpu.memory_space<smem>>
    %121 = vector.broadcast %120 : f32 to vector<4x256xf32>
    %122 = arith.addf %119, %121 : vector<4x256xf32>
    %123 = arith.mulf %122, %104 : vector<4x256xf32>
    %c0_54 = arith.constant 0 : index
    %124 = memref.load %arg6[%c0_54] : memref<6xf32, #tpu.memory_space<smem>>
    %125 = vector.broadcast %124 : f32 to vector<4x256xf32>
    %126 = arith.addf %123, %125 : vector<4x256xf32>
    %c3_55 = arith.constant 3 : index
    %127 = memref.load %arg7[%c3_55] : memref<4xf32, #tpu.memory_space<smem>>
    %128 = vector.broadcast %127 : f32 to vector<4x256xf32>
    %129 = arith.mulf %128, %104 : vector<4x256xf32>
    %c2_56 = arith.constant 2 : index
    %130 = memref.load %arg7[%c2_56] : memref<4xf32, #tpu.memory_space<smem>>
    %131 = vector.broadcast %130 : f32 to vector<4x256xf32>
    %132 = arith.addf %129, %131 : vector<4x256xf32>
    %133 = arith.mulf %132, %104 : vector<4x256xf32>
    %c1_57 = arith.constant 1 : index
    %134 = memref.load %arg7[%c1_57] : memref<4xf32, #tpu.memory_space<smem>>
    %135 = vector.broadcast %134 : f32 to vector<4x256xf32>
    %136 = arith.addf %133, %135 : vector<4x256xf32>
    %137 = arith.mulf %136, %104 : vector<4x256xf32>
    %c0_58 = arith.constant 0 : index
    %138 = memref.load %arg7[%c0_58] : memref<4xf32, #tpu.memory_space<smem>>
    %139 = vector.broadcast %138 : f32 to vector<4x256xf32>
    %140 = arith.addf %137, %139 : vector<4x256xf32>
    %141 = arith.mulf %140, %104 : vector<4x256xf32>
    %142 = math.absf %141 : vector<4x256xf32>
    %cst_59 = arith.constant 1.000000e+00 : f32
    %143 = vector.broadcast %cst_59 : f32 to vector<4x256xf32>
    %144 = arith.addf %143, %142 : vector<4x256xf32>
    %145 = tpu.reciprocal %144 {approx = true} : vector<4x256xf32> -> vector<4x256xf32>
    %146 = arith.mulf %126, %145 : vector<4x256xf32>
    %cst_60 = arith.constant 0.000000e+00 : f32
    %147 = vector.broadcast %cst_60 : f32 to vector<4x256xf32>
    %c17_i32_61 = arith.constant 17 : i32
    %148 = tpu.dynamic_rotate %146 by %c17_i32_61 dim 1 : vector<4x256xf32>, i32 -> vector<4x256xf32>
    %cst_62 = arith.constant 0.000000e+00 : f32
    %149 = vector.shape_cast %22 : vector<1x256xi1> to vector<1x256xi1>
    %150 = vector.broadcast %149 : vector<1x256xi1> to vector<4x256xi1>
    %151 = vector.broadcast %cst_62 : f32 to vector<4x256xf32>
    %152 = arith.select %150, %148, %151 : vector<4x256xi1>, vector<4x256xf32>
    %c0_63 = arith.constant 0 : index
    %c0_64 = arith.constant 0 : index
    %c0_65 = arith.constant 0 : index
    %153 = vector.load %arg4[%c0_63, %c0_64, %c0_65] : memref<9x4x4xf32, #tpu.memory_space<vmem>>, vector<1x4x4xf32>
    %154 = vector.shape_cast %153 : vector<1x4x4xf32> to vector<4x4xf32>
    %cst_66 = arith.constant dense<0.000000e+00> : vector<4x256xf32>
    %155 = tpu.matmul %154, %152, %cst_66 {dimension_numbers = #tpu.dot_dimension_numbers<[1], [0], [0], [1], [0, 0, 1, 1], [], []>} : vector<4x4xf32>, vector<4x256xf32>, vector<4x256xf32> -> vector<4x256xf32>
    %156 = arith.addf %147, %155 : vector<4x256xf32>
    %c16_i32_67 = arith.constant 16 : i32
    %157 = tpu.dynamic_rotate %146 by %c16_i32_67 dim 1 : vector<4x256xf32>, i32 -> vector<4x256xf32>
    %cst_68 = arith.constant 0.000000e+00 : f32
    %158 = vector.shape_cast %19 : vector<1x256xi1> to vector<1x256xi1>
    %159 = vector.broadcast %158 : vector<1x256xi1> to vector<4x256xi1>
    %160 = vector.broadcast %cst_68 : f32 to vector<4x256xf32>
    %161 = arith.select %159, %157, %160 : vector<4x256xi1>, vector<4x256xf32>
    %c1_69 = arith.constant 1 : index
    %c0_70 = arith.constant 0 : index
    %c0_71 = arith.constant 0 : index
    %162 = vector.load %arg4[%c1_69, %c0_70, %c0_71] : memref<9x4x4xf32, #tpu.memory_space<vmem>>, vector<1x4x4xf32>
    %163 = vector.shape_cast %162 : vector<1x4x4xf32> to vector<4x4xf32>
    %cst_72 = arith.constant dense<0.000000e+00> : vector<4x256xf32>
    %164 = tpu.matmul %163, %161, %cst_72 {dimension_numbers = #tpu.dot_dimension_numbers<[1], [0], [0], [1], [0, 0, 1, 1], [], []>} : vector<4x4xf32>, vector<4x256xf32>, vector<4x256xf32> -> vector<4x256xf32>
    %165 = arith.addf %156, %164 : vector<4x256xf32>
    %c15_i32_73 = arith.constant 15 : i32
    %166 = tpu.dynamic_rotate %146 by %c15_i32_73 dim 1 : vector<4x256xf32>, i32 -> vector<4x256xf32>
    %cst_74 = arith.constant 0.000000e+00 : f32
    %167 = vector.shape_cast %23 : vector<1x256xi1> to vector<1x256xi1>
    %168 = vector.broadcast %167 : vector<1x256xi1> to vector<4x256xi1>
    %169 = vector.broadcast %cst_74 : f32 to vector<4x256xf32>
    %170 = arith.select %168, %166, %169 : vector<4x256xi1>, vector<4x256xf32>
    %c2_75 = arith.constant 2 : index
    %c0_76 = arith.constant 0 : index
    %c0_77 = arith.constant 0 : index
    %171 = vector.load %arg4[%c2_75, %c0_76, %c0_77] : memref<9x4x4xf32, #tpu.memory_space<vmem>>, vector<1x4x4xf32>
    %172 = vector.shape_cast %171 : vector<1x4x4xf32> to vector<4x4xf32>
    %cst_78 = arith.constant dense<0.000000e+00> : vector<4x256xf32>
    %173 = tpu.matmul %172, %170, %cst_78 {dimension_numbers = #tpu.dot_dimension_numbers<[1], [0], [0], [1], [0, 0, 1, 1], [], []>} : vector<4x4xf32>, vector<4x256xf32>, vector<4x256xf32> -> vector<4x256xf32>
    %174 = arith.addf %165, %173 : vector<4x256xf32>
    %c1_i32_79 = arith.constant 1 : i32
    %175 = tpu.dynamic_rotate %146 by %c1_i32_79 dim 1 : vector<4x256xf32>, i32 -> vector<4x256xf32>
    %cst_80 = arith.constant 0.000000e+00 : f32
    %176 = vector.shape_cast %15 : vector<1x256xi1> to vector<1x256xi1>
    %177 = vector.broadcast %176 : vector<1x256xi1> to vector<4x256xi1>
    %178 = vector.broadcast %cst_80 : f32 to vector<4x256xf32>
    %179 = arith.select %177, %175, %178 : vector<4x256xi1>, vector<4x256xf32>
    %c3_81 = arith.constant 3 : index
    %c0_82 = arith.constant 0 : index
    %c0_83 = arith.constant 0 : index
    %180 = vector.load %arg4[%c3_81, %c0_82, %c0_83] : memref<9x4x4xf32, #tpu.memory_space<vmem>>, vector<1x4x4xf32>
    %181 = vector.shape_cast %180 : vector<1x4x4xf32> to vector<4x4xf32>
    %cst_84 = arith.constant dense<0.000000e+00> : vector<4x256xf32>
    %182 = tpu.matmul %181, %179, %cst_84 {dimension_numbers = #tpu.dot_dimension_numbers<[1], [0], [0], [1], [0, 0, 1, 1], [], []>} : vector<4x4xf32>, vector<4x256xf32>, vector<4x256xf32> -> vector<4x256xf32>
    %183 = arith.addf %174, %182 : vector<4x256xf32>
    %c4_85 = arith.constant 4 : index
    %c0_86 = arith.constant 0 : index
    %c0_87 = arith.constant 0 : index
    %184 = vector.load %arg4[%c4_85, %c0_86, %c0_87] : memref<9x4x4xf32, #tpu.memory_space<vmem>>, vector<1x4x4xf32>
    %185 = vector.shape_cast %184 : vector<1x4x4xf32> to vector<4x4xf32>
    %cst_88 = arith.constant dense<0.000000e+00> : vector<4x256xf32>
    %186 = tpu.matmul %185, %146, %cst_88 {dimension_numbers = #tpu.dot_dimension_numbers<[1], [0], [0], [1], [0, 0, 1, 1], [], []>} : vector<4x4xf32>, vector<4x256xf32>, vector<4x256xf32> -> vector<4x256xf32>
    %187 = arith.addf %183, %186 : vector<4x256xf32>
    %c255_i32_89 = arith.constant 255 : i32
    %188 = tpu.dynamic_rotate %146 by %c255_i32_89 dim 1 : vector<4x256xf32>, i32 -> vector<4x256xf32>
    %cst_90 = arith.constant 0.000000e+00 : f32
    %189 = vector.shape_cast %17 : vector<1x256xi1> to vector<1x256xi1>
    %190 = vector.broadcast %189 : vector<1x256xi1> to vector<4x256xi1>
    %191 = vector.broadcast %cst_90 : f32 to vector<4x256xf32>
    %192 = arith.select %190, %188, %191 : vector<4x256xi1>, vector<4x256xf32>
    %c5_91 = arith.constant 5 : index
    %c0_92 = arith.constant 0 : index
    %c0_93 = arith.constant 0 : index
    %193 = vector.load %arg4[%c5_91, %c0_92, %c0_93] : memref<9x4x4xf32, #tpu.memory_space<vmem>>, vector<1x4x4xf32>
    %194 = vector.shape_cast %193 : vector<1x4x4xf32> to vector<4x4xf32>
    %cst_94 = arith.constant dense<0.000000e+00> : vector<4x256xf32>
    %195 = tpu.matmul %194, %192, %cst_94 {dimension_numbers = #tpu.dot_dimension_numbers<[1], [0], [0], [1], [0, 0, 1, 1], [], []>} : vector<4x4xf32>, vector<4x256xf32>, vector<4x256xf32> -> vector<4x256xf32>
    %196 = arith.addf %187, %195 : vector<4x256xf32>
    %c241_i32_95 = arith.constant 241 : i32
    %197 = tpu.dynamic_rotate %146 by %c241_i32_95 dim 1 : vector<4x256xf32>, i32 -> vector<4x256xf32>
    %cst_96 = arith.constant 0.000000e+00 : f32
    %198 = vector.shape_cast %24 : vector<1x256xi1> to vector<1x256xi1>
    %199 = vector.broadcast %198 : vector<1x256xi1> to vector<4x256xi1>
    %200 = vector.broadcast %cst_96 : f32 to vector<4x256xf32>
    %201 = arith.select %199, %197, %200 : vector<4x256xi1>, vector<4x256xf32>
    %c6_97 = arith.constant 6 : index
    %c0_98 = arith.constant 0 : index
    %c0_99 = arith.constant 0 : index
    %202 = vector.load %arg4[%c6_97, %c0_98, %c0_99] : memref<9x4x4xf32, #tpu.memory_space<vmem>>, vector<1x4x4xf32>
    %203 = vector.shape_cast %202 : vector<1x4x4xf32> to vector<4x4xf32>
    %cst_100 = arith.constant dense<0.000000e+00> : vector<4x256xf32>
    %204 = tpu.matmul %203, %201, %cst_100 {dimension_numbers = #tpu.dot_dimension_numbers<[1], [0], [0], [1], [0, 0, 1, 1], [], []>} : vector<4x4xf32>, vector<4x256xf32>, vector<4x256xf32> -> vector<4x256xf32>
    %205 = arith.addf %196, %204 : vector<4x256xf32>
    %c240_i32_101 = arith.constant 240 : i32
    %206 = tpu.dynamic_rotate %146 by %c240_i32_101 dim 1 : vector<4x256xf32>, i32 -> vector<4x256xf32>
    %cst_102 = arith.constant 0.000000e+00 : f32
    %207 = vector.shape_cast %21 : vector<1x256xi1> to vector<1x256xi1>
    %208 = vector.broadcast %207 : vector<1x256xi1> to vector<4x256xi1>
    %209 = vector.broadcast %cst_102 : f32 to vector<4x256xf32>
    %210 = arith.select %208, %206, %209 : vector<4x256xi1>, vector<4x256xf32>
    %c7_103 = arith.constant 7 : index
    %c0_104 = arith.constant 0 : index
    %c0_105 = arith.constant 0 : index
    %211 = vector.load %arg4[%c7_103, %c0_104, %c0_105] : memref<9x4x4xf32, #tpu.memory_space<vmem>>, vector<1x4x4xf32>
    %212 = vector.shape_cast %211 : vector<1x4x4xf32> to vector<4x4xf32>
    %cst_106 = arith.constant dense<0.000000e+00> : vector<4x256xf32>
    %213 = tpu.matmul %212, %210, %cst_106 {dimension_numbers = #tpu.dot_dimension_numbers<[1], [0], [0], [1], [0, 0, 1, 1], [], []>} : vector<4x4xf32>, vector<4x256xf32>, vector<4x256xf32> -> vector<4x256xf32>
    %214 = arith.addf %205, %213 : vector<4x256xf32>
    %c239_i32_107 = arith.constant 239 : i32
    %215 = tpu.dynamic_rotate %146 by %c239_i32_107 dim 1 : vector<4x256xf32>, i32 -> vector<4x256xf32>
    %cst_108 = arith.constant 0.000000e+00 : f32
    %216 = vector.shape_cast %25 : vector<1x256xi1> to vector<1x256xi1>
    %217 = vector.broadcast %216 : vector<1x256xi1> to vector<4x256xi1>
    %218 = vector.broadcast %cst_108 : f32 to vector<4x256xf32>
    %219 = arith.select %217, %215, %218 : vector<4x256xi1>, vector<4x256xf32>
    %c8_109 = arith.constant 8 : index
    %c0_110 = arith.constant 0 : index
    %c0_111 = arith.constant 0 : index
    %220 = vector.load %arg4[%c8_109, %c0_110, %c0_111] : memref<9x4x4xf32, #tpu.memory_space<vmem>>, vector<1x4x4xf32>
    %221 = vector.shape_cast %220 : vector<1x4x4xf32> to vector<4x4xf32>
    %cst_112 = arith.constant dense<0.000000e+00> : vector<4x256xf32>
    %222 = tpu.matmul %221, %219, %cst_112 {dimension_numbers = #tpu.dot_dimension_numbers<[1], [0], [0], [1], [0, 0, 1, 1], [], []>} : vector<4x4xf32>, vector<4x256xf32>, vector<4x256xf32> -> vector<4x256xf32>
    %223 = arith.addf %214, %222 : vector<4x256xf32>
    %224 = vector.broadcast %3 : vector<4x1xf32> to vector<4x256xf32>
    %225 = arith.addf %223, %224 : vector<4x256xf32>
    %226 = arith.addf %225, %1 : vector<4x256xf32>
    %c5_113 = arith.constant 5 : index
    %227 = memref.load %arg6[%c5_113] : memref<6xf32, #tpu.memory_space<smem>>
    %228 = vector.broadcast %227 : f32 to vector<4x256xf32>
    %229 = arith.mulf %228, %226 : vector<4x256xf32>
    %c4_114 = arith.constant 4 : index
    %230 = memref.load %arg6[%c4_114] : memref<6xf32, #tpu.memory_space<smem>>
    %231 = vector.broadcast %230 : f32 to vector<4x256xf32>
    %232 = arith.addf %229, %231 : vector<4x256xf32>
    %233 = arith.mulf %232, %226 : vector<4x256xf32>
    %c3_115 = arith.constant 3 : index
    %234 = memref.load %arg6[%c3_115] : memref<6xf32, #tpu.memory_space<smem>>
    %235 = vector.broadcast %234 : f32 to vector<4x256xf32>
    %236 = arith.addf %233, %235 : vector<4x256xf32>
    %237 = arith.mulf %236, %226 : vector<4x256xf32>
    %c2_116 = arith.constant 2 : index
    %238 = memref.load %arg6[%c2_116] : memref<6xf32, #tpu.memory_space<smem>>
    %239 = vector.broadcast %238 : f32 to vector<4x256xf32>
    %240 = arith.addf %237, %239 : vector<4x256xf32>
    %241 = arith.mulf %240, %226 : vector<4x256xf32>
    %c1_117 = arith.constant 1 : index
    %242 = memref.load %arg6[%c1_117] : memref<6xf32, #tpu.memory_space<smem>>
    %243 = vector.broadcast %242 : f32 to vector<4x256xf32>
    %244 = arith.addf %241, %243 : vector<4x256xf32>
    %245 = arith.mulf %244, %226 : vector<4x256xf32>
    %c0_118 = arith.constant 0 : index
    %246 = memref.load %arg6[%c0_118] : memref<6xf32, #tpu.memory_space<smem>>
    %247 = vector.broadcast %246 : f32 to vector<4x256xf32>
    %248 = arith.addf %245, %247 : vector<4x256xf32>
    %c3_119 = arith.constant 3 : index
    %249 = memref.load %arg7[%c3_119] : memref<4xf32, #tpu.memory_space<smem>>
    %250 = vector.broadcast %249 : f32 to vector<4x256xf32>
    %251 = arith.mulf %250, %226 : vector<4x256xf32>
    %c2_120 = arith.constant 2 : index
    %252 = memref.load %arg7[%c2_120] : memref<4xf32, #tpu.memory_space<smem>>
    %253 = vector.broadcast %252 : f32 to vector<4x256xf32>
    %254 = arith.addf %251, %253 : vector<4x256xf32>
    %255 = arith.mulf %254, %226 : vector<4x256xf32>
    %c1_121 = arith.constant 1 : index
    %256 = memref.load %arg7[%c1_121] : memref<4xf32, #tpu.memory_space<smem>>
    %257 = vector.broadcast %256 : f32 to vector<4x256xf32>
    %258 = arith.addf %255, %257 : vector<4x256xf32>
    %259 = arith.mulf %258, %226 : vector<4x256xf32>
    %c0_122 = arith.constant 0 : index
    %260 = memref.load %arg7[%c0_122] : memref<4xf32, #tpu.memory_space<smem>>
    %261 = vector.broadcast %260 : f32 to vector<4x256xf32>
    %262 = arith.addf %259, %261 : vector<4x256xf32>
    %263 = arith.mulf %262, %226 : vector<4x256xf32>
    %264 = math.absf %263 : vector<4x256xf32>
    %cst_123 = arith.constant 1.000000e+00 : f32
    %265 = vector.broadcast %cst_123 : f32 to vector<4x256xf32>
    %266 = arith.addf %265, %264 : vector<4x256xf32>
    %267 = tpu.reciprocal %266 {approx = true} : vector<4x256xf32> -> vector<4x256xf32>
    %268 = arith.mulf %248, %267 : vector<4x256xf32>
    %269 = vector.shape_cast %268 : vector<4x256xf32> to vector<1x4x256xf32>
    %c0_124 = arith.constant 0 : index
    %c0_125 = arith.constant 0 : index
    %c0_126 = arith.constant 0 : index
    %270 = vector.load %arg8[%c0_124, %c0_125, %c0_126] : memref<1x4x256xf32, #tpu.memory_space<vmem>>, vector<1x4x256xf32>
    tpu.vector_store %arg8[%c0_124, %c0_125, %c0_126], %269 {strides = array<i32>} : memref<1x4x256xf32, #tpu.memory_space<vmem>>, vector<1x4x256xf32>,
    return
  }
  func.func @transform_0(%arg0: i32) -> (i32, i32, i32) {
    %c0_i32 = arith.constant 0 : i32
    %c0_i32_0 = arith.constant 0 : i32
    %c0_i32_1 = arith.constant 0 : i32
    return %arg0, %c0_i32, %c0_i32_0 : i32, i32, i32
  }
  func.func @transform_1(%arg0: i32) -> (i32, i32, i32) {
    %c0_i32 = arith.constant 0 : i32
    %c0_i32_0 = arith.constant 0 : i32
    %c0_i32_1 = arith.constant 0 : i32
    %c0_i32_2 = arith.constant 0 : i32
    return %c0_i32, %c0_i32_0, %c0_i32_1 : i32, i32, i32
  }
  func.func @transform_2(%arg0: i32) -> (i32, i32) {
    %c0_i32 = arith.constant 0 : i32
    %c0_i32_0 = arith.constant 0 : i32
    %c0_i32_1 = arith.constant 0 : i32
    return %c0_i32, %c0_i32_0 : i32, i32
  }
  func.func @transform_3(%arg0: i32) -> (i32, i32, i32) {
    %c0_i32 = arith.constant 0 : i32
    %c0_i32_0 = arith.constant 0 : i32
    %c0_i32_1 = arith.constant 0 : i32
    %c0_i32_2 = arith.constant 0 : i32
    return %c0_i32, %c0_i32_0, %c0_i32_1 : i32, i32, i32
  }
  func.func @transform_4(%arg0: i32) -> (i32, i32) {
    %c0_i32 = arith.constant 0 : i32
    %c0_i32_0 = arith.constant 0 : i32
    %c0_i32_1 = arith.constant 0 : i32
    return %c0_i32, %c0_i32_0 : i32, i32
  }
  func.func @transform_5(%arg0: i32) -> i32 {
    %c0_i32 = arith.constant 0 : i32
    %c0_i32_0 = arith.constant 0 : i32
    return %c0_i32 : i32
  }
  func.func @transform_6(%arg0: i32) -> i32 {
    %c0_i32 = arith.constant 0 : i32
    %c0_i32_0 = arith.constant 0 : i32
    return %c0_i32 : i32
  }
  func.func @transform_7(%arg0: i32) -> (i32, i32, i32) {
    %c0_i32 = arith.constant 0 : i32
    %c0_i32_0 = arith.constant 0 : i32
    %c0_i32_1 = arith.constant 0 : i32
    return %arg0, %c0_i32, %c0_i32_0 : i32, i32, i32
  }
}

</mosaic_0001>

<llo_original>
// kernel: rational_basic_block_forward.1
$region0: #{rational_basic_block_forward.1}
  #allocation0 [shape = 'u32[]', space=smem, size = 0x4, offset = 0x4, fixed_abs, tag = 'smem constant byte address 0x4 - core index']
  #allocation1 [shape = 'u32[144,128]{1,0:T(1,128)}', space=vmem, size = 0x12000, scoped, tag = 'internal scratch']
  %s0 = inlined_call_operand.vmem [shape: f32[2,4,256], index: 0, kind: input, shape index: {}]
  %s1 = inlined_call_operand.vmem [shape: f32[9,4,4], index: 1, kind: input, shape index: {}]
  %s2 = inlined_call_operand.vmem [shape: f32[4,1], index: 2, kind: input, shape index: {}]
  %s3 = inlined_call_operand.vmem [shape: f32[9,4,4], index: 3, kind: input, shape index: {}]
  %s4 = inlined_call_operand.vmem [shape: f32[4,1], index: 4, kind: input, shape index: {}]
  %s5 = inlined_call_operand.vmem [shape: f32[6], index: 5, kind: input, shape index: {}]
  %s6 = inlined_call_operand.vmem [shape: f32[4], index: 6, kind: input, shape index: {}]
  %s7 = inlined_call_operand.vmem [shape: f32[2,4,256], index: 7, kind: output, shape index: {}]
  %s8 = sld [smem:[#allocation0]]
  $region69: #{rational_basic_block_forward.1} parent=0
    _
  %s10 = ssub.s32 1, %s8
  %s11 = scalar_select 0, %s10, %s8
  $region1: #{rational_basic_block_forward.1} parent=0
    #allocation2 [shape = 'u8[512]{0}', space=smem, size = 0x200, scoped, tag = 'input window, operand 5, single buffered']
    #allocation3 [shape = 's32[2]{0}', space=sflag, size = 0x8, scoped, tag = 'scoped memory for rational_basic_block_forward.1']
    #allocation4 [shape = 'u8[512]{0}', space=smem, size = 0x200, scoped, tag = 'input window, operand 6, single buffered']
    #allocation5 [shape = 's32[1]{0}', space=sflag, size = 0x4, scoped, tag = 'scoped memory for rational_basic_block_forward.1']
    %12 = vsyncpa [#allocation3], 0
    %13 = vsyncpa [#allocation5], 0
    loop: start=0, step=1, limit=4
    $region2: #{rational_basic_block_forward.1} parent=1 // loop_pre_header
      _
    $region3: #{rational_basic_block_forward.1} parent=1 // loop_header
      %s15 = sphi 0, %s19
      %p16 = scmp.ge.s32.totalorder %s15, 4
      %s25 = sphi 0, %s27
      %s28 = sphi 0, %s25
      %s29 = sphi 0, %s28
      %s45 = sphi 0, %s29
      %s49 = sphi 0, %s49
      %s51 = sphi 0, %s49
      %s52 = sphi 0, %s51
      %s66 = sphi 0, %s52
      %s70 = sphi 0, %s70
      %s72 = sphi 0, %s70
      %s73 = sphi 0, %s72
      %s87 = sphi 0, %s73
      %s91 = sphi 0, %s91
      %s93 = sphi 0, %s91
      %s94 = sphi 0, %s93
      %s108 = sphi 0, %s94
      %s112 = sphi 0, %s112
      %s114 = sphi 0, %s112
      %s115 = sphi 0, %s114
      %s129 = sphi 0, %s115
      %s133 = sphi 0, %s133
      %s135 = sphi 0, %s133
      %s136 = sphi 0, %s135
      %s150 = sphi 0, %s136
      %s154 = sphi 0, %s154
      %s156 = sphi 0, %s154
      %s157 = sphi 0, %s156
      %s171 = sphi 0, %s157
      %s177 = sphi 0, %s179
      %s180 = sphi 0, %s177
      %s181 = sphi 0, %s180
      %s197 = sphi 0, %s181
    $region4: #{rational_basic_block_forward.1} parent=1 // loop_header_branch
      %18 = sbr.rel (%p16) target = $region8
    $region5: #{rational_basic_block_forward.1} parent=1 // loop_body
      %s20 = ssub.s32 %s15, 1
      %s21 = ssub.s32 %s15, 2
      %s22 = sadd.s32 %s15, 1
      %s23 = ssub.s32 %s15, %s22
      %p24 = scmp.eq.s32.totalorder %s23, 0
      %s26 = sadd.s32 %s25, 1
      %s27 = scalar_select %p24, %s25, %s26
      %p30 = pneg %p24
      %p31 = scmp.eq.s32.totalorder %s15, 1
      %p32 = por %p30, %p31
      %p33 = scmp.ne.s32.totalorder %s25, %s28
      %p34 = scmp.eq.s32.totalorder %s15, 0
      %p35 = por %p33, %p34
      %p36 = scmp.ne.s32.totalorder %s25, %s28
      %p37 = scmp.eq.s32.totalorder %s20, 1
      %p38 = por %p36, %p37
      %p39 = scmp.ne.s32.totalorder %s28, %s29
      %p40 = scmp.eq.s32.totalorder %s20, 0
      %p41 = por %p39, %p40
      %p42 = scmp.ne.s32.totalorder %s28, %s29
      %p43 = scmp.eq.s32.totalorder %s21, 1
      %p44 = por %p42, %p43
      %p46 = scmp.ne.s32.totalorder %s29, %s45
      %p47 = scmp.eq.s32.totalorder %s21, 0
      %p48 = por %p46, %p47
      %s50 = sadd.s32 %s49, 1
      %p53 = scmp.eq.s32.totalorder %s15, 1
      %p54 = scmp.ne.s32.totalorder %s49, %s51
      %p55 = scmp.eq.s32.totalorder %s15, 0
      %p56 = por %p54, %p55
      %p57 = scmp.ne.s32.totalorder %s49, %s51
      %p58 = scmp.eq.s32.totalorder %s20, 1
      %p59 = por %p57, %p58
      %p60 = scmp.ne.s32.totalorder %s51, %s52
      %p61 = scmp.eq.s32.totalorder %s20, 0
      %p62 = por %p60, %p61
      %p63 = scmp.ne.s32.totalorder %s51, %s52
      %p64 = scmp.eq.s32.totalorder %s21, 1
      %p65 = por %p63, %p64
      %p67 = scmp.ne.s32.totalorder %s52, %s66
      %p68 = scmp.eq.s32.totalorder %s21, 0
      %p69 = por %p67, %p68
      %s71 = sadd.s32 %s70, 1
      %p74 = scmp.eq.s32.totalorder %s15, 1
      %p75 = scmp.ne.s32.totalorder %s70, %s72
      %p76 = scmp.eq.s32.totalorder %s15, 0
      %p77 = por %p75, %p76
      %p78 = scmp.ne.s32.totalorder %s70, %s72
      %p79 = scmp.eq.s32.totalorder %s20, 1
      %p80 = por %p78, %p79
      %p81 = scmp.ne.s32.totalorder %s72, %s73
      %p82 = scmp.eq.s32.totalorder %s20, 0
      %p83 = por %p81, %p82
      %p84 = scmp.ne.s32.totalorder %s72, %s73
      %p85 = scmp.eq.s32.totalorder %s21, 1
      %p86 = por %p84, %p85
      %p88 = scmp.ne.s32.totalorder %s73, %s87
      %p89 = scmp.eq.s32.totalorder %s21, 0
      %p90 = por %p88, %p89
      %s92 = sadd.s32 %s91, 1
      %p95 = scmp.eq.s32.totalorder %s15, 1
      %p96 = scmp.ne.s32.totalorder %s91, %s93
      %p97 = scmp.eq.s32.totalorder %s15, 0
      %p98 = por %p96, %p97
      %p99 = scmp.ne.s32.totalorder %s91, %s93
      %p100 = scmp.eq.s32.totalorder %s20, 1
      %p101 = por %p99, %p100
      %p102 = scmp.ne.s32.totalorder %s93, %s94
      %p103 = scmp.eq.s32.totalorder %s20, 0
      %p104 = por %p102, %p103
      %p105 = scmp.ne.s32.totalorder %s93, %s94
      %p106 = scmp.eq.s32.totalorder %s21, 1
      %p107 = por %p105, %p106
      %p109 = scmp.ne.s32.totalorder %s94, %s108
      %p110 = scmp.eq.s32.totalorder %s21, 0
      %p111 = por %p109, %p110
      %s113 = sadd.s32 %s112, 1
      %p116 = scmp.eq.s32.totalorder %s15, 1
      %p117 = scmp.ne.s32.totalorder %s112, %s114
      %p118 = scmp.eq.s32.totalorder %s15, 0
      %p119 = por %p117, %p118
      %p120 = scmp.ne.s32.totalorder %s112, %s114
      %p121 = scmp.eq.s32.totalorder %s20, 1
      %p122 = por %p120, %p121
      %p123 = scmp.ne.s32.totalorder %s114, %s115
      %p124 = scmp.eq.s32.totalorder %s20, 0
      %p125 = por %p123, %p124
      %p126 = scmp.ne.s32.totalorder %s114, %s115
      %p127 = scmp.eq.s32.totalorder %s21, 1
      %p128 = por %p126, %p127
      %p130 = scmp.ne.s32.totalorder %s115, %s129
      %p131 = scmp.eq.s32.totalorder %s21, 0
      %p132 = por %p130, %p131
      %s134 = sadd.s32 %s133, 1
      %p137 = scmp.eq.s32.totalorder %s15, 1
      %p138 = scmp.ne.s32.totalorder %s133, %s135
      %p139 = scmp.eq.s32.totalorder %s15, 0
      %p140 = por %p138, %p139
      %p141 = scmp.ne.s32.totalorder %s133, %s135
      %p142 = scmp.eq.s32.totalorder %s20, 1
      %p143 = por %p141, %p142
      %p144 = scmp.ne.s32.totalorder %s135, %s136
      %p145 = scmp.eq.s32.totalorder %s20, 0
      %p146 = por %p144, %p145
      %p147 = scmp.ne.s32.totalorder %s135, %s136
      %p148 = scmp.eq.s32.totalorder %s21, 1
      %p149 = por %p147, %p148
      %p151 = scmp.ne.s32.totalorder %s136, %s150
      %p152 = scmp.eq.s32.totalorder %s21, 0
      %p153 = por %p151, %p152
      %s155 = sadd.s32 %s154, 1
      %p158 = scmp.eq.s32.totalorder %s15, 1
      %p159 = scmp.ne.s32.totalorder %s154, %s156
      %p160 = scmp.eq.s32.totalorder %s15, 0
      %p161 = por %p159, %p160
      %p162 = scmp.ne.s32.totalorder %s154, %s156
      %p163 = scmp.eq.s32.totalorder %s20, 1
      %p164 = por %p162, %p163
      %p165 = scmp.ne.s32.totalorder %s156, %s157
      %p166 = scmp.eq.s32.totalorder %s20, 0
      %p167 = por %p165, %p166
      %p168 = scmp.ne.s32.totalorder %s156, %s157
      %p169 = scmp.eq.s32.totalorder %s21, 1
      %p170 = por %p168, %p169
      %p172 = scmp.ne.s32.totalorder %s157, %s171
      %p173 = scmp.eq.s32.totalorder %s21, 0
      %p174 = por %p172, %p173
      %s175 = ssub.s32 %s15, %s22
      %p176 = scmp.eq.s32.totalorder %s175, 0
      %s178 = sadd.s32 %s177, 1
      %s179 = scalar_select %p176, %s177, %s178
      %p182 = pneg %p176
      %p183 = scmp.eq.s32.totalorder %s15, 1
      %p184 = por %p182, %p183
      %p185 = scmp.ne.s32.totalorder %s177, %s180
      %p186 = scmp.eq.s32.totalorder %s15, 0
      %p187 = por %p185, %p186
      %p188 = scmp.ne.s32.totalorder %s177, %s180
      %p189 = scmp.eq.s32.totalorder %s20, 1
      %p190 = por %p188, %p189
      %p191 = scmp.ne.s32.totalorder %s180, %s181
      %p192 = scmp.eq.s32.totalorder %s20, 0
      %p193 = por %p191, %p192
      %p194 = scmp.ne.s32.totalorder %s180, %s181
      %p195 = scmp.eq.s32.totalorder %s21, 1
      %p196 = por %p194, %p195
      %p198 = scmp.ne.s32.totalorder %s181, %s197
      %p199 = scmp.eq.s32.totalorder %s21, 0
      %p200 = por %p198, %p199
      %p201 = scmp.le.s32.totalorder 1, %s15
      %p202 = scmp.lt.s32.totalorder %s15, 3
      %p203 = pnand %p201, %p202
      %p204 = pneg %p203
      // Predicated region
      $region9: #{rational_basic_block_forward.1} parent=5 // pred_check
        _
      $region10: #{rational_basic_block_forward.1} parent=5 // pred_check_branch
        %206 = sbr.rel (%p203) target = $region12
      $region11: #{rational_basic_block_forward.1} parent=5 // pred_region
        %s207 = ssub.s32 %s15, 1
        // Predicated region
        $region13: #{rational_basic_block_forward.1} parent=11 // pred_check
          %p208 = pneg %p62
        $region14: #{rational_basic_block_forward.1} parent=11 // pred_check_branch
          %210 = sbr.rel (%p208) target = $region16
        $region15: #{rational_basic_block_forward.1} parent=11 // pred_region
          _
        $region16: #{rational_basic_block_forward.1} parent=11 // pred_fallthru
          _
        // Predicated region
        $region17: #{rational_basic_block_forward.1} parent=11 // pred_check
          %p211 = pneg %p83
        $region18: #{rational_basic_block_forward.1} parent=11 // pred_check_branch
          %213 = sbr.rel (%p211) target = $region20
        $region19: #{rational_basic_block_forward.1} parent=11 // pred_region
          _
        $region20: #{rational_basic_block_forward.1} parent=11 // pred_fallthru
          _
        // Predicated region
        $region21: #{rational_basic_block_forward.1} parent=11 // pred_check
          %p214 = pneg %p104
        $region22: #{rational_basic_block_forward.1} parent=11 // pred_check_branch
          %216 = sbr.rel (%p214) target = $region24
        $region23: #{rational_basic_block_forward.1} parent=11 // pred_region
          _
        $region24: #{rational_basic_block_forward.1} parent=11 // pred_fallthru
          _
        // Predicated region
        $region25: #{rational_basic_block_forward.1} parent=11 // pred_check
          %p217 = pneg %p125
        $region26: #{rational_basic_block_forward.1} parent=11 // pred_check_branch
          %219 = sbr.rel (%p217) target = $region28
        $region27: #{rational_basic_block_forward.1} parent=11 // pred_region
          _
        $region28: #{rational_basic_block_forward.1} parent=11 // pred_fallthru
          _
        // Predicated region
        $region29: #{rational_basic_block_forward.1} parent=11 // pred_check
          %p220 = pneg %p146
        $region30: #{rational_basic_block_forward.1} parent=11 // pred_check_branch
          %222 = sbr.rel (%p220) target = $region32
        $region31: #{rational_basic_block_forward.1} parent=11 // pred_region
          %s224 = ssub.s32 16, 16
          %225 = vsyncadd [#allocation3], %s224
          %s227 = sshll.u32 %s5, 4
          %s228 = int_to_ptr.vmem [resolvable:$true] %s227
          %230 = dma.vmem_to_smem %s228, 16, [#allocation2], [#allocation3]
        $region32: #{rational_basic_block_forward.1} parent=11 // pred_fallthru
          _
        // Predicated region
        $region33: #{rational_basic_block_forward.1} parent=11 // pred_check
          %p231 = pneg %p167
        $region34: #{rational_basic_block_forward.1} parent=11 // pred_check_branch
          %233 = sbr.rel (%p231) target = $region36
        $region35: #{rational_basic_block_forward.1} parent=11 // pred_region
          %s235 = ssub.s32 16, 16
          %236 = vsyncadd [#allocation5], %s235
          %s238 = sshll.u32 %s6, 4
          %s239 = int_to_ptr.vmem [resolvable:$true] %s238
          %241 = dma.vmem_to_smem %s239, 16, [#allocation4], [#allocation5]
        $region36: #{rational_basic_block_forward.1} parent=11 // pred_fallthru
          _
      $region12: #{rational_basic_block_forward.1} parent=5 // pred_fallthru
        _
      %p242 = scmp.lt.s32.totalorder %s15, 2
      // Predicated region
      $region37: #{rational_basic_block_forward.1} parent=5 // pred_check
        %p243 = pneg %p242
      $region38: #{rational_basic_block_forward.1} parent=5 // pred_check_branch
        %245 = sbr.rel (%p243) target = $region40
      $region39: #{rational_basic_block_forward.1} parent=5 // pred_region
        // Predicated region
        $region41: #{rational_basic_block_forward.1} parent=39 // pred_check
          %p246 = pneg %p35
        $region42: #{rational_basic_block_forward.1} parent=39 // pred_check_branch
          %248 = sbr.rel (%p246) target = $region44
        $region43: #{rational_basic_block_forward.1} parent=39 // pred_region
          %p249 = scmp.lt.s32.totalorder %s15, 1
          %s250 = scalar_select %p249, %s15, 1
          %s251 = smul.addr %s250, 2
          %s252 = smul.addr %s251, 4
          %s253 = scalar_lea.vmem %s0, %s252
        $region44: #{rational_basic_block_forward.1} parent=39 // pred_fallthru
          _
      $region40: #{rational_basic_block_forward.1} parent=5 // pred_fallthru
        _
      %p254 = scmp.le.s32.totalorder 1, %s15
      %p255 = scmp.lt.s32.totalorder %s15, 3
      %p256 = pnand %p254, %p255
      %p257 = pneg %p256
      // Predicated region
      $region45: #{rational_basic_block_forward.1} parent=5 // pred_check
        _
      $region46: #{rational_basic_block_forward.1} parent=5 // pred_check_branch
        %259 = sbr.rel (%p256) target = $region48
      $region47: #{rational_basic_block_forward.1} parent=5 // pred_region
        %s260 = ssub.s32 %s15, 1
        // Predicated region
        $region49: #{rational_basic_block_forward.1} parent=47 // pred_check
          %p261 = pneg %p146
        $region50: #{rational_basic_block_forward.1} parent=47 // pred_check_branch
          %263 = sbr.rel (%p261) target = $region52
        $region51: #{rational_basic_block_forward.1} parent=47 // pred_region
          %264 = dma.done [#allocation3], 16
        $region52: #{rational_basic_block_forward.1} parent=47 // pred_fallthru
          _
        // Predicated region
        $region53: #{rational_basic_block_forward.1} parent=47 // pred_check
          %p265 = pneg %p167
        $region54: #{rational_basic_block_forward.1} parent=47 // pred_check_branch
          %267 = sbr.rel (%p265) target = $region56
        $region55: #{rational_basic_block_forward.1} parent=47 // pred_region
          %268 = dma.done [#allocation5], 16
        $region56: #{rational_basic_block_forward.1} parent=47 // pred_fallthru
          _
        %269 = sfence
        %p270 = scmp.lt.s32.totalorder %s20, 1
        %s271 = scalar_select %p270, %s20, 1
        %s272 = smul.addr %s271, 2
        %s273 = smul.addr %s272, 4
        %s274 = scalar_lea.vmem %s0, %s273
        %p275 = pneg %p41
        %p276 = pneg %p38
        %p277 = pneg %p62
        %p278 = pneg %p59
        %p279 = pneg %p83
        %p280 = pneg %p80
        %p281 = pneg %p104
        %p282 = pneg %p101
        %p283 = pneg %p125
        %p284 = pneg %p122
        %p285 = pneg %p146
        %p286 = pneg %p143
        %p287 = pneg %p167
        %p288 = pneg %p164
        %p289 = pneg %p193
        %p290 = pneg %p190
        %p291 = scmp.lt.s32.totalorder %s20, 1
        %s292 = scalar_select %p291, %s20, 1
        %s293 = smul.addr %s292, 2
        %s294 = smul.addr %s293, 4
        %s295 = scalar_lea.vmem %s7, %s294
        %p296 = scmp.lt.s32.totalorder %s20, 1
        %s297 = scalar_select %p296, %s20, 1
        %s298 = smul.addr %s297, 2
        %s299 = smul.addr %s298, 4
        %s300 = scalar_lea.vmem %s0, %s299
        %p301 = scmp.lt.s32.totalorder %s20, 1
        %s302 = scalar_select %p301, %s20, 1
        %s303 = smul.addr %s302, 2
        %s304 = smul.addr %s303, 4
        %s305 = scalar_lea.vmem %s7, %s304
        %v306 = vld [vmem:[%s300] sm:$0xff]
        %v307 = vld [vmem:[%s2] sm:$0xf]
        %v308 = vld [vmem:[%s4] sm:$0xf]
        %v309 = vlaneseq
        %v310 = vand.u32 %v309, 127
        %v311 = vadd.s32 %v310, 128
        %v312 = vcvt.s32.f32 %v310
        %v313 = vcvt.s32.f32 %v311
        %v314 = vadd.f32 %v312, 0.5
        %v315 = vadd.f32 %v313, 0.5
        %v316 = vmul.f32 %v314, 0.0625
        %v317 = vmul.f32 %v315, 0.0625
        %v318 = vfloor.f32 %v316
        %v319 = vfloor.f32 %v317
        %v320 = vmul.f32 %v318, 16.0
        %v321 = vmul.f32 %v319, 16.0
        %v322 = vsub.f32 %v312, %v320
        %v323 = vsub.f32 %v313, %v321
        %vm324 = vcmp.gt.f32.partialorder %v322, 0.5
        %vm325 = vcmp.gt.f32.partialorder %v323, 0.5
        %vm326 = vcmp.lt.f32.partialorder %v322, 14.5
        %vm327 = vcmp.lt.f32.partialorder %v323, 14.5
        %vm328 = vcmp.ge.s32.totalorder %v310, 16
        %vm329 = vcmp.ge.s32.totalorder %v311, 16
        %vm330 = vcmp.lt.s32.totalorder %v310, 240
        %vm331 = vcmp.lt.s32.totalorder %v311, 240
        %vm332 = vmand %vm328, %vm324
        %vm333 = vmand %vm329, %vm325
        %vm334 = vmand %vm328, %vm326
        %vm335 = vmand %vm329, %vm327
        %vm336 = vmand %vm330, %vm324
        %vm337 = vmand %vm331, %vm325
        %vm338 = vmand %vm330, %vm326
        %vm339 = vmand %vm331, %vm327
        %v341 = vcombine.high %v306, %v306
        %343 = vrot.lane.b32.xlu0 %v306, 17
        %v344 = vpop.permute.xlu0 %343
        %345 = vrot.lane.b32.xlu0 %v341, 17
        %v346 = vpop.permute.xlu0 %345
        %vm347 = vcmp.lt.s32.totalorder %v310, 17
        %v348 = vsel %vm347, %v344, %v346
        %v349 = vsel %vm347, %v346, %v344
        %v350 = vsel %vm332, 1, 0
        %v351 = vsel %vm333, 1, 0
        %vm352 = vcmp.eq.s32.totalorder %v350, 1
        %vm353 = vcmp.eq.s32.totalorder %v351, 1
        %v354 = vsel %vm352, %v349, 0.0
        %v355 = vsel %vm353, %v348, 0.0
        %v356 = vld [vmem:[%s1] sm:$0xf]
        %357 = vrot.lane.b32.xlu0 %v306, 16
        %v358 = vpop.permute.xlu0 %357
        %359 = vrot.lane.b32.xlu0 %v341, 16
        %v360 = vpop.permute.xlu0 %359
        %vm361 = vcmp.lt.s32.totalorder %v310, 16
        %v362 = vsel %vm361, %v358, %v360
        %v363 = vsel %vm361, %v360, %v358
        %v364 = vsel %vm328, 1, 0
        %v365 = vsel %vm329, 1, 0
        %vm366 = vcmp.eq.s32.totalorder %v364, 1
        %vm367 = vcmp.eq.s32.totalorder %v365, 1
        %v368 = vsel %vm366, %v363, 0.0
        %v369 = vsel %vm367, %v362, 0.0
        %s370 = scalar_lea.vmem %s1, 4
        %v371 = vld [vmem:[%s370] sm:$0xf]
        %vm372 = vcmask 31744
        %v374 = vsel %vm372, %v371, 0
        %vm376 = vcmask 1043456
        %v378 = vsel %vm376, %v368, 0
        %v381 = vsel %vm376, %v369, 0
        %383 = vmatprep.subr.mxu0 %v381
        %384 = vmatpush1.msra.mxu0 %v378
        %385 = vmatprep.subr.mxu0 0.0
        %386 = vmatpush1.msra.mxu0 0.0
        %387 = vmatprep.subr.mxu0 0.0
        %388 = vmatpush1.msra.mxu0 0.0
        %389 = vmatprep.subr.mxu0 0.0
        %390 = vmatpush1.msra.mxu0 0.0
        %391 = vmatprep.subr.mxu0 0.0
        %392 = vmatpush1.msra.mxu0 0.0
        %393 = vmatprep.subr.mxu0 0.0
        %394 = vmatpush1.msra.mxu0 0.0
        %395 = vmatprep.subr.mxu0 0.0
        %396 = vmatpush1.msra.mxu0 0.0
        %397 = vmatprep.subr.mxu0 0.0
        %398 = vmatpush1.msra.mxu0 0.0
        %399 = vmatprep.subr.mxu0 0.0
        %400 = vmatpush1.msra.mxu0 0.0
        %401 = vmatprep.subr.mxu0 0.0
        %402 = vmatpush1.msra.mxu0 0.0
        %403 = vmatprep.subr.mxu0 0.0
        %404 = vmatpush1.msra.mxu0 0.0
        %405 = vmatprep.subr.mxu0 0.0
        %406 = vmatpush1.msra.mxu0 0.0
        %407 = vmatprep.subr.mxu0 0.0
        %408 = vmatpush1.msra.mxu0 0.0
        %409 = vmatprep.subr.mxu0 0.0
        %410 = vmatpush1.msra.mxu0 0.0
        %411 = vmatprep.subr.mxu0 0.0
        %412 = vmatpush1.msra.mxu0 0.0
        %413 = vmatprep.subr.mxu0 0.0
        %414 = vmatpush1.msra.mxu0 0.0
        %415 = vmatprep.subr.mxu0 0.0
        %416 = vmatpush1.msra.mxu0 0.0
        %417 = vmatprep.subr.mxu0 0.0
        %418 = vmatpush1.msra.mxu0 0.0
        %419 = vmatprep.subr.mxu0 0.0
        %420 = vmatpush1.msra.mxu0 0.0
        %421 = vmatprep.subr.mxu0 0.0
        %422 = vmatpush1.msra.mxu0 0.0
        %423 = vmatprep.subr.mxu0 0.0
        %424 = vmatpush1.msra.mxu0 0.0
        %425 = vmatprep.subr.mxu0 0.0
        %426 = vmatpush1.msra.mxu0 0.0
        %427 = vmatprep.subr.mxu0 0.0
        %428 = vmatpush1.msra.mxu0 0.0
        %429 = vmatprep.subr.mxu0 0.0
        %430 = vmatpush1.msra.mxu0 0.0
        %431 = vmatprep.subr.mxu0 0.0
        %432 = vmatpush1.msra.mxu0 0.0
        %433 = vmatprep.subr.mxu0 0.0
        %434 = vmatpush1.msra.mxu0 0.0
        %435 = vmatprep.subr.mxu0 0.0
        %436 = vmatpush1.msra.mxu0 0.0
        %437 = vmatprep.subr.mxu0 0.0
        %438 = vmatpush1.msra.mxu0 0.0
        %439 = vmatprep.subr.mxu0 0.0
        %440 = vmatpush1.msra.mxu0 0.0
        %441 = vmatprep.subr.mxu0 0.0
        %442 = vmatpush1.msra.mxu0 0.0
        %443 = vmatprep.subr.mxu0 0.0
        %444 = vmatpush1.msra.mxu0 0.0
        %445 = vmatprep.subr.mxu0 0.0
        %446 = vmatpush1.msra.mxu0 0.0
        %447 = vmatprep.mubr.f32.mxu0 0.0
        %448 = vmatmul.mubr.f32.gmra.mrb[0].mxu0 %v374
        %v449 = vpop.f32.mrb[0].mxu0
        %v450 = vadd.f32 0.0, %v449
        %v451 = vpop.f32.mrb[0].mxu0
        %v452 = vadd.f32 0.0, %v451
        %453 = vdwg.mxu0
        %v455 = vsel %vm372, %v356, 0
        %v458 = vsel %vm376, %v354, 0
        %v461 = vsel %vm376, %v355, 0
        %463 = vmatprep.subr.mxu0 %v461
        %464 = vmatpush1.msra.mxu0 %v458
        %465 = vmatprep.subr.mxu0 0.0
        %466 = vmatpush1.msra.mxu0 0.0
        %467 = vmatprep.subr.mxu0 0.0
        %468 = vmatpush1.msra.mxu0 0.0
        %469 = vmatprep.subr.mxu0 0.0
        %470 = vmatpush1.msra.mxu0 0.0
        %471 = vmatprep.subr.mxu0 0.0
        %472 = vmatpush1.msra.mxu0 0.0
        %473 = vmatprep.subr.mxu0 0.0
        %474 = vmatpush1.msra.mxu0 0.0
        %475 = vmatprep.subr.mxu0 0.0
        %476 = vmatpush1.msra.mxu0 0.0
        %477 = vmatprep.subr.mxu0 0.0
        %478 = vmatpush1.msra.mxu0 0.0
        %479 = vmatprep.subr.mxu0 0.0
        %480 = vmatpush1.msra.mxu0 0.0
        %481 = vmatprep.subr.mxu0 0.0
        %482 = vmatpush1.msra.mxu0 0.0
        %483 = vmatprep.subr.mxu0 0.0
        %484 = vmatpush1.msra.mxu0 0.0
        %485 = vmatprep.subr.mxu0 0.0
        %486 = vmatpush1.msra.mxu0 0.0
        %487 = vmatprep.subr.mxu0 0.0
        %488 = vmatpush1.msra.mxu0 0.0
        %489 = vmatprep.subr.mxu0 0.0
        %490 = vmatpush1.msra.mxu0 0.0
        %491 = vmatprep.subr.mxu0 0.0
        %492 = vmatpush1.msra.mxu0 0.0
        %493 = vmatprep.subr.mxu0 0.0
        %494 = vmatpush1.msra.mxu0 0.0
        %495 = vmatprep.subr.mxu0 0.0
        %496 = vmatpush1.msra.mxu0 0.0
        %497 = vmatprep.subr.mxu0 0.0
        %498 = vmatpush1.msra.mxu0 0.0
        %499 = vmatprep.subr.mxu0 0.0
        %500 = vmatpush1.msra.mxu0 0.0
        %501 = vmatprep.subr.mxu0 0.0
        %502 = vmatpush1.msra.mxu0 0.0
        %503 = vmatprep.subr.mxu0 0.0
        %504 = vmatpush1.msra.mxu0 0.0
        %505 = vmatprep.subr.mxu0 0.0
        %506 = vmatpush1.msra.mxu0 0.0
        %507 = vmatprep.subr.mxu0 0.0
        %508 = vmatpush1.msra.mxu0 0.0
        %509 = vmatprep.subr.mxu0 0.0
        %510 = vmatpush1.msra.mxu0 0.0
        %511 = vmatprep.subr.mxu0 0.0
        %512 = vmatpush1.msra.mxu0 0.0
        %513 = vmatprep.subr.mxu0 0.0
        %514 = vmatpush1.msra.mxu0 0.0
        %515 = vmatprep.subr.mxu0 0.0
        %516 = vmatpush1.msra.mxu0 0.0
        %517 = vmatprep.subr.mxu0 0.0
        %518 = vmatpush1.msra.mxu0 0.0
        %519 = vmatprep.subr.mxu0 0.0
        %520 = vmatpush1.msra.mxu0 0.0
        %521 = vmatprep.subr.mxu0 0.0
        %522 = vmatpush1.msra.mxu0 0.0
        %523 = vmatprep.subr.mxu0 0.0
        %524 = vmatpush1.msra.mxu0 0.0
        %525 = vmatprep.subr.mxu0 0.0
        %526 = vmatpush1.msra.mxu0 0.0
        %527 = vmatprep.mubr.f32.mxu0 0.0
        %528 = vmatmul.mubr.f32.gmra.mrb[0].mxu0 %v455
        %v529 = vpop.f32.mrb[0].mxu0
        %v530 = vadd.f32 %v450, %v529
        %v531 = vpop.f32.mrb[0].mxu0
        %v532 = vadd.f32 %v452, %v531
        %533 = vdwg.mxu0
        %534 = vrot.lane.b32.xlu0 %v306, 15
        %v535 = vpop.permute.xlu0 %534
        %536 = vrot.lane.b32.xlu0 %v341, 15
        %v537 = vpop.permute.xlu0 %536
        %vm538 = vcmp.lt.s32.totalorder %v310, 15
        %v539 = vsel %vm538, %v535, %v537
        %v540 = vsel %vm538, %v537, %v535
        %v541 = vsel %vm334, 1, 0
        %v542 = vsel %vm335, 1, 0
        %vm543 = vcmp.eq.s32.totalorder %v541, 1
        %vm544 = vcmp.eq.s32.totalorder %v542, 1
        %v545 = vsel %vm543, %v540, 0.0
        %v546 = vsel %vm544, %v539, 0.0
        %s547 = scalar_lea.vmem %s1, 8
        %v548 = vld [vmem:[%s547] sm:$0xf]
        %v550 = vsel %vm372, %v548, 0
        %v553 = vsel %vm376, %v545, 0
        %v556 = vsel %vm376, %v546, 0
        %558 = vmatprep.subr.mxu0 %v556
        %559 = vmatpush1.msra.mxu0 %v553
        %560 = vmatprep.subr.mxu0 0.0
        %561 = vmatpush1.msra.mxu0 0.0
        %562 = vmatprep.subr.mxu0 0.0
        %563 = vmatpush1.msra.mxu0 0.0
        %564 = vmatprep.subr.mxu0 0.0
        %565 = vmatpush1.msra.mxu0 0.0
        %566 = vmatprep.subr.mxu0 0.0
        %567 = vmatpush1.msra.mxu0 0.0
        %568 = vmatprep.subr.mxu0 0.0
        %569 = vmatpush1.msra.mxu0 0.0
        %570 = vmatprep.subr.mxu0 0.0
        %571 = vmatpush1.msra.mxu0 0.0
        %572 = vmatprep.subr.mxu0 0.0
        %573 = vmatpush1.msra.mxu0 0.0
        %574 = vmatprep.subr.mxu0 0.0
        %575 = vmatpush1.msra.mxu0 0.0
        %576 = vmatprep.subr.mxu0 0.0
        %577 = vmatpush1.msra.mxu0 0.0
        %578 = vmatprep.subr.mxu0 0.0
        %579 = vmatpush1.msra.mxu0 0.0
        %580 = vmatprep.subr.mxu0 0.0
        %581 = vmatpush1.msra.mxu0 0.0
        %582 = vmatprep.subr.mxu0 0.0
        %583 = vmatpush1.msra.mxu0 0.0
        %584 = vmatprep.subr.mxu0 0.0
        %585 = vmatpush1.msra.mxu0 0.0
        %586 = vmatprep.subr.mxu0 0.0
        %587 = vmatpush1.msra.mxu0 0.0
        %588 = vmatprep.subr.mxu0 0.0
        %589 = vmatpush1.msra.mxu0 0.0
        %590 = vmatprep.subr.mxu0 0.0
        %591 = vmatpush1.msra.mxu0 0.0
        %592 = vmatprep.subr.mxu0 0.0
        %593 = vmatpush1.msra.mxu0 0.0
        %594 = vmatprep.subr.mxu0 0.0
        %595 = vmatpush1.msra.mxu0 0.0
        %596 = vmatprep.subr.mxu0 0.0
        %597 = vmatpush1.msra.mxu0 0.0
        %598 = vmatprep.subr.mxu0 0.0
        %599 = vmatpush1.msra.mxu0 0.0
        %600 = vmatprep.subr.mxu0 0.0
        %601 = vmatpush1.msra.mxu0 0.0
        %602 = vmatprep.subr.mxu0 0.0
        %603 = vmatpush1.msra.mxu0 0.0
        %604 = vmatprep.subr.mxu0 0.0
        %605 = vmatpush1.msra.mxu0 0.0
        %606 = vmatprep.subr.mxu0 0.0
        %607 = vmatpush1.msra.mxu0 0.0
        %608 = vmatprep.subr.mxu0 0.0
        %609 = vmatpush1.msra.mxu0 0.0
        %610 = vmatprep.subr.mxu0 0.0
        %611 = vmatpush1.msra.mxu0 0.0
        %612 = vmatprep.subr.mxu0 0.0
        %613 = vmatpush1.msra.mxu0 0.0
        %614 = vmatprep.subr.mxu0 0.0
        %615 = vmatpush1.msra.mxu0 0.0
        %616 = vmatprep.subr.mxu0 0.0
        %617 = vmatpush1.msra.mxu0 0.0
        %618 = vmatprep.subr.mxu0 0.0
        %619 = vmatpush1.msra.mxu0 0.0
        %620 = vmatprep.subr.mxu0 0.0
        %621 = vmatpush1.msra.mxu0 0.0
        %622 = vmatprep.mubr.f32.mxu0 0.0
        %623 = vmatmul.mubr.f32.gmra.mrb[0].mxu0 %v550
        %v624 = vpop.f32.mrb[0].mxu0
        %v625 = vadd.f32 0.0, %v624
        %v626 = vpop.f32.mrb[0].mxu0
        %v627 = vadd.f32 0.0, %v626
        %628 = vdwg.mxu0
        %v629 = vadd.f32 %v530, %v625
        %v630 = vadd.f32 %v532, %v627
        %631 = vrot.lane.b32.xlu0 %v306, 1
        %v632 = vpop.permute.xlu0 %631
        %633 = vrot.lane.b32.xlu0 %v341, 1
        %v634 = vpop.permute.xlu0 %633
        %vm635 = vcmp.lt.s32.totalorder %v310, 1
        %v636 = vsel %vm635, %v632, %v634
        %v637 = vsel %vm635, %v634, %v632
        %v638 = vsel %vm324, 1, 0
        %v639 = vsel %vm325, 1, 0
        %vm640 = vcmp.eq.s32.totalorder %v638, 1
        %vm641 = vcmp.eq.s32.totalorder %v639, 1
        %v642 = vsel %vm640, %v637, 0.0
        %v643 = vsel %vm641, %v636, 0.0
        %s644 = scalar_lea.vmem %s1, 12
        %v645 = vld [vmem:[%s644] sm:$0xf]
        %v647 = vsel %vm372, %v645, 0
        %v650 = vsel %vm376, %v642, 0
        %v653 = vsel %vm376, %v643, 0
        %655 = vmatprep.subr.mxu0 %v653
        %656 = vmatpush1.msra.mxu0 %v650
        %657 = vmatprep.subr.mxu0 0.0
        %658 = vmatpush1.msra.mxu0 0.0
        %659 = vmatprep.subr.mxu0 0.0
        %660 = vmatpush1.msra.mxu0 0.0
        %661 = vmatprep.subr.mxu0 0.0
        %662 = vmatpush1.msra.mxu0 0.0
        %663 = vmatprep.subr.mxu0 0.0
        %664 = vmatpush1.msra.mxu0 0.0
        %665 = vmatprep.subr.mxu0 0.0
        %666 = vmatpush1.msra.mxu0 0.0
        %667 = vmatprep.subr.mxu0 0.0
        %668 = vmatpush1.msra.mxu0 0.0
        %669 = vmatprep.subr.mxu0 0.0
        %670 = vmatpush1.msra.mxu0 0.0
        %671 = vmatprep.subr.mxu0 0.0
        %672 = vmatpush1.msra.mxu0 0.0
        %673 = vmatprep.subr.mxu0 0.0
        %674 = vmatpush1.msra.mxu0 0.0
        %675 = vmatprep.subr.mxu0 0.0
        %676 = vmatpush1.msra.mxu0 0.0
        %677 = vmatprep.subr.mxu0 0.0
        %678 = vmatpush1.msra.mxu0 0.0
        %679 = vmatprep.subr.mxu0 0.0
        %680 = vmatpush1.msra.mxu0 0.0
        %681 = vmatprep.subr.mxu0 0.0
        %682 = vmatpush1.msra.mxu0 0.0
        %683 = vmatprep.subr.mxu0 0.0
        %684 = vmatpush1.msra.mxu0 0.0
        %685 = vmatprep.subr.mxu0 0.0
        %686 = vmatpush1.msra.mxu0 0.0
        %687 = vmatprep.subr.mxu0 0.0
        %688 = vmatpush1.msra.mxu0 0.0
        %689 = vmatprep.subr.mxu0 0.0
        %690 = vmatpush1.msra.mxu0 0.0
        %691 = vmatprep.subr.mxu0 0.0
        %692 = vmatpush1.msra.mxu0 0.0
        %693 = vmatprep.subr.mxu0 0.0
        %694 = vmatpush1.msra.mxu0 0.0
        %695 = vmatprep.subr.mxu0 0.0
        %696 = vmatpush1.msra.mxu0 0.0
        %697 = vmatprep.subr.mxu0 0.0
        %698 = vmatpush1.msra.mxu0 0.0
        %699 = vmatprep.subr.mxu0 0.0
        %700 = vmatpush1.msra.mxu0 0.0
        %701 = vmatprep.subr.mxu0 0.0
        %702 = vmatpush1.msra.mxu0 0.0
        %703 = vmatprep.subr.mxu0 0.0
        %704 = vmatpush1.msra.mxu0 0.0
        %705 = vmatprep.subr.mxu0 0.0
        %706 = vmatpush1.msra.mxu0 0.0
        %707 = vmatprep.subr.mxu0 0.0
        %708 = vmatpush1.msra.mxu0 0.0
        %709 = vmatprep.subr.mxu0 0.0
        %710 = vmatpush1.msra.mxu0 0.0
        %711 = vmatprep.subr.mxu0 0.0
        %712 = vmatpush1.msra.mxu0 0.0
        %713 = vmatprep.subr.mxu0 0.0
        %714 = vmatpush1.msra.mxu0 0.0
        %715 = vmatprep.subr.mxu0 0.0
        %716 = vmatpush1.msra.mxu0 0.0
        %717 = vmatprep.subr.mxu0 0.0
        %718 = vmatpush1.msra.mxu0 0.0
        %719 = vmatprep.mubr.f32.mxu0 0.0
        %720 = vmatmul.mubr.f32.gmra.mrb[0].mxu0 %v647
        %v721 = vpop.f32.mrb[0].mxu0
        %v722 = vadd.f32 0.0, %v721
        %v723 = vpop.f32.mrb[0].mxu0
        %v724 = vadd.f32 0.0, %v723
        %725 = vdwg.mxu0
        %v726 = vadd.f32 %v629, %v722
        %v727 = vadd.f32 %v630, %v724
        %s728 = scalar_lea.vmem %s1, 16
        %v729 = vld [vmem:[%s728] sm:$0xf]
        %v731 = vsel %vm372, %v729, 0
        %v733 = vsel %vm376, %v306, 0
        %v735 = vsel %vm376, %v341, 0
        %737 = vmatprep.subr.mxu0 %v735
        %738 = vmatpush1.msra.mxu0 %v733
        %739 = vmatprep.subr.mxu0 0.0
        %740 = vmatpush1.msra.mxu0 0.0
        %741 = vmatprep.subr.mxu0 0.0
        %742 = vmatpush1.msra.mxu0 0.0
        %743 = vmatprep.subr.mxu0 0.0
        %744 = vmatpush1.msra.mxu0 0.0
        %745 = vmatprep.subr.mxu0 0.0
        %746 = vmatpush1.msra.mxu0 0.0
        %747 = vmatprep.subr.mxu0 0.0
        %748 = vmatpush1.msra.mxu0 0.0
        %749 = vmatprep.subr.mxu0 0.0
        %750 = vmatpush1.msra.mxu0 0.0
        %751 = vmatprep.subr.mxu0 0.0
        %752 = vmatpush1.msra.mxu0 0.0
        %753 = vmatprep.subr.mxu0 0.0
        %754 = vmatpush1.msra.mxu0 0.0
        %755 = vmatprep.subr.mxu0 0.0
        %756 = vmatpush1.msra.mxu0 0.0
        %757 = vmatprep.subr.mxu0 0.0
        %758 = vmatpush1.msra.mxu0 0.0
        %759 = vmatprep.subr.mxu0 0.0
        %760 = vmatpush1.msra.mxu0 0.0
        %761 = vmatprep.subr.mxu0 0.0
        %762 = vmatpush1.msra.mxu0 0.0
        %763 = vmatprep.subr.mxu0 0.0
        %764 = vmatpush1.msra.mxu0 0.0
        %765 = vmatprep.subr.mxu0 0.0
        %766 = vmatpush1.msra.mxu0 0.0
        %767 = vmatprep.subr.mxu0 0.0
        %768 = vmatpush1.msra.mxu0 0.0
        %769 = vmatprep.subr.mxu0 0.0
        %770 = vmatpush1.msra.mxu0 0.0
        %771 = vmatprep.subr.mxu0 0.0
        %772 = vmatpush1.msra.mxu0 0.0
        %773 = vmatprep.subr.mxu0 0.0
        %774 = vmatpush1.msra.mxu0 0.0
        %775 = vmatprep.subr.mxu0 0.0
        %776 = vmatpush1.msra.mxu0 0.0
        %777 = vmatprep.subr.mxu0 0.0
        %778 = vmatpush1.msra.mxu0 0.0
        %779 = vmatprep.subr.mxu0 0.0
        %780 = vmatpush1.msra.mxu0 0.0
        %781 = vmatprep.subr.mxu0 0.0
        %782 = vmatpush1.msra.mxu0 0.0
        %783 = vmatprep.subr.mxu0 0.0
        %784 = vmatpush1.msra.mxu0 0.0
        %785 = vmatprep.subr.mxu0 0.0
        %786 = vmatpush1.msra.mxu0 0.0
        %787 = vmatprep.subr.mxu0 0.0
        %788 = vmatpush1.msra.mxu0 0.0
        %789 = vmatprep.subr.mxu0 0.0
        %790 = vmatpush1.msra.mxu0 0.0
        %791 = vmatprep.subr.mxu0 0.0
        %792 = vmatpush1.msra.mxu0 0.0
        %793 = vmatprep.subr.mxu0 0.0
        %794 = vmatpush1.msra.mxu0 0.0
        %795 = vmatprep.subr.mxu0 0.0
        %796 = vmatpush1.msra.mxu0 0.0
        %797 = vmatprep.subr.mxu0 0.0
        %798 = vmatpush1.msra.mxu0 0.0
        %799 = vmatprep.subr.mxu0 0.0
        %800 = vmatpush1.msra.mxu0 0.0
        %801 = vmatprep.mubr.f32.mxu0 0.0
        %802 = vmatmul.mubr.f32.gmra.mrb[0].mxu0 %v731
        %v803 = vpop.f32.mrb[0].mxu0
        %v804 = vadd.f32 0.0, %v803
        %v805 = vpop.f32.mrb[0].mxu0
        %v806 = vadd.f32 0.0, %v805
        %807 = vdwg.mxu0
        %v808 = vadd.f32 %v726, %v804
        %v809 = vadd.f32 %v727, %v806
        %810 = vrot.lane.b32.xlu0 %v306, 127
        %v811 = vpop.permute.xlu0 %810
        %812 = vrot.lane.b32.xlu0 %v341, 127
        %v813 = vpop.permute.xlu0 %812
        %vm814 = vcmp.lt.s32.totalorder %v310, 127
        %v815 = vsel %vm814, %v811, %v813
        %v816 = vsel %vm814, %v813, %v811
        %v817 = vsel %vm326, 1, 0
        %v818 = vsel %vm327, 1, 0
        %vm819 = vcmp.eq.s32.totalorder %v817, 1
        %vm820 = vcmp.eq.s32.totalorder %v818, 1
        %v821 = vsel %vm819, %v815, 0.0
        %v822 = vsel %vm820, %v816, 0.0
        %s823 = scalar_lea.vmem %s1, 20
        %v824 = vld [vmem:[%s823] sm:$0xf]
        %v826 = vsel %vm372, %v824, 0
        %v829 = vsel %vm376, %v821, 0
        %v832 = vsel %vm376, %v822, 0
        %834 = vmatprep.subr.mxu0 %v832
        %835 = vmatpush1.msra.mxu0 %v829
        %836 = vmatprep.subr.mxu0 0.0
        %837 = vmatpush1.msra.mxu0 0.0
        %838 = vmatprep.subr.mxu0 0.0
        %839 = vmatpush1.msra.mxu0 0.0
        %840 = vmatprep.subr.mxu0 0.0
        %841 = vmatpush1.msra.mxu0 0.0
        %842 = vmatprep.subr.mxu0 0.0
        %843 = vmatpush1.msra.mxu0 0.0
        %844 = vmatprep.subr.mxu0 0.0
        %845 = vmatpush1.msra.mxu0 0.0
        %846 = vmatprep.subr.mxu0 0.0
        %847 = vmatpush1.msra.mxu0 0.0
        %848 = vmatprep.subr.mxu0 0.0
        %849 = vmatpush1.msra.mxu0 0.0
        %850 = vmatprep.subr.mxu0 0.0
        %851 = vmatpush1.msra.mxu0 0.0
        %852 = vmatprep.subr.mxu0 0.0
        %853 = vmatpush1.msra.mxu0 0.0
        %854 = vmatprep.subr.mxu0 0.0
        %855 = vmatpush1.msra.mxu0 0.0
        %856 = vmatprep.subr.mxu0 0.0
        %857 = vmatpush1.msra.mxu0 0.0
        %858 = vmatprep.subr.mxu0 0.0
        %859 = vmatpush1.msra.mxu0 0.0
        %860 = vmatprep.subr.mxu0 0.0
        %861 = vmatpush1.msra.mxu0 0.0
        %862 = vmatprep.subr.mxu0 0.0
        %863 = vmatpush1.msra.mxu0 0.0
        %864 = vmatprep.subr.mxu0 0.0
        %865 = vmatpush1.msra.mxu0 0.0
        %866 = vmatprep.subr.mxu0 0.0
        %867 = vmatpush1.msra.mxu0 0.0
        %868 = vmatprep.subr.mxu0 0.0
        %869 = vmatpush1.msra.mxu0 0.0
        %870 = vmatprep.subr.mxu0 0.0
        %871 = vmatpush1.msra.mxu0 0.0
        %872 = vmatprep.subr.mxu0 0.0
        %873 = vmatpush1.msra.mxu0 0.0
        %874 = vmatprep.subr.mxu0 0.0
        %875 = vmatpush1.msra.mxu0 0.0
        %876 = vmatprep.subr.mxu0 0.0
        %877 = vmatpush1.msra.mxu0 0.0
        %878 = vmatprep.subr.mxu0 0.0
        %879 = vmatpush1.msra.mxu0 0.0
        %880 = vmatprep.subr.mxu0 0.0
        %881 = vmatpush1.msra.mxu0 0.0
        %882 = vmatprep.subr.mxu0 0.0
        %883 = vmatpush1.msra.mxu0 0.0
        %884 = vmatprep.subr.mxu0 0.0
        %885 = vmatpush1.msra.mxu0 0.0
        %886 = vmatprep.subr.mxu0 0.0
        %887 = vmatpush1.msra.mxu0 0.0
        %888 = vmatprep.subr.mxu0 0.0
        %889 = vmatpush1.msra.mxu0 0.0
        %890 = vmatprep.subr.mxu0 0.0
        %891 = vmatpush1.msra.mxu0 0.0
        %892 = vmatprep.subr.mxu0 0.0
        %893 = vmatpush1.msra.mxu0 0.0
        %894 = vmatprep.subr.mxu0 0.0
        %895 = vmatpush1.msra.mxu0 0.0
        %896 = vmatprep.subr.mxu0 0.0
        %897 = vmatpush1.msra.mxu0 0.0
        %898 = vmatprep.mubr.f32.mxu0 0.0
        %899 = vmatmul.mubr.f32.gmra.mrb[0].mxu0 %v826
        %v900 = vpop.f32.mrb[0].mxu0
        %v901 = vadd.f32 0.0, %v900
        %v902 = vpop.f32.mrb[0].mxu0
        %v903 = vadd.f32 0.0, %v902
        %904 = vdwg.mxu0
        %v905 = vadd.f32 %v808, %v901
        %v906 = vadd.f32 %v809, %v903
        %907 = vrot.lane.b32.xlu0 %v306, 113
        %v908 = vpop.permute.xlu0 %907
        %909 = vrot.lane.b32.xlu0 %v341, 113
        %v910 = vpop.permute.xlu0 %909
        %vm911 = vcmp.lt.s32.totalorder %v310, 113
        %v912 = vsel %vm911, %v908, %v910
        %v913 = vsel %vm911, %v910, %v908
        %v914 = vsel %vm336, 1, 0
        %v915 = vsel %vm337, 1, 0
        %vm916 = vcmp.eq.s32.totalorder %v914, 1
        %vm917 = vcmp.eq.s32.totalorder %v915, 1
        %v918 = vsel %vm916, %v912, 0.0
        %v919 = vsel %vm917, %v913, 0.0
        %s920 = scalar_lea.vmem %s1, 24
        %v921 = vld [vmem:[%s920] sm:$0xf]
        %v923 = vsel %vm372, %v921, 0
        %v926 = vsel %vm376, %v918, 0
        %v929 = vsel %vm376, %v919, 0
        %931 = vmatprep.subr.mxu0 %v929
        %932 = vmatpush1.msra.mxu0 %v926
        %933 = vmatprep.subr.mxu0 0.0
        %934 = vmatpush1.msra.mxu0 0.0
        %935 = vmatprep.subr.mxu0 0.0
        %936 = vmatpush1.msra.mxu0 0.0
        %937 = vmatprep.subr.mxu0 0.0
        %938 = vmatpush1.msra.mxu0 0.0
        %939 = vmatprep.subr.mxu0 0.0
        %940 = vmatpush1.msra.mxu0 0.0
        %941 = vmatprep.subr.mxu0 0.0
        %942 = vmatpush1.msra.mxu0 0.0
        %943 = vmatprep.subr.mxu0 0.0
        %944 = vmatpush1.msra.mxu0 0.0
        %945 = vmatprep.subr.mxu0 0.0
        %946 = vmatpush1.msra.mxu0 0.0
        %947 = vmatprep.subr.mxu0 0.0
        %948 = vmatpush1.msra.mxu0 0.0
        %949 = vmatprep.subr.mxu0 0.0
        %950 = vmatpush1.msra.mxu0 0.0
        %951 = vmatprep.subr.mxu0 0.0
        %952 = vmatpush1.msra.mxu0 0.0
        %953 = vmatprep.subr.mxu0 0.0
        %954 = vmatpush1.msra.mxu0 0.0
        %955 = vmatprep.subr.mxu0 0.0
        %956 = vmatpush1.msra.mxu0 0.0
        %957 = vmatprep.subr.mxu0 0.0
        %958 = vmatpush1.msra.mxu0 0.0
        %959 = vmatprep.subr.mxu0 0.0
        %960 = vmatpush1.msra.mxu0 0.0
        %961 = vmatprep.subr.mxu0 0.0
        %962 = vmatpush1.msra.mxu0 0.0
        %963 = vmatprep.subr.mxu0 0.0
        %964 = vmatpush1.msra.mxu0 0.0
        %965 = vmatprep.subr.mxu0 0.0
        %966 = vmatpush1.msra.mxu0 0.0
        %967 = vmatprep.subr.mxu0 0.0
        %968 = vmatpush1.msra.mxu0 0.0
        %969 = vmatprep.subr.mxu0 0.0
        %970 = vmatpush1.msra.mxu0 0.0
        %971 = vmatprep.subr.mxu0 0.0
        %972 = vmatpush1.msra.mxu0 0.0
        %973 = vmatprep.subr.mxu0 0.0
        %974 = vmatpush1.msra.mxu0 0.0
        %975 = vmatprep.subr.mxu0 0.0
        %976 = vmatpush1.msra.mxu0 0.0
        %977 = vmatprep.subr.mxu0 0.0
        %978 = vmatpush1.msra.mxu0 0.0
        %979 = vmatprep.subr.mxu0 0.0
        %980 = vmatpush1.msra.mxu0 0.0
        %981 = vmatprep.subr.mxu0 0.0
        %982 = vmatpush1.msra.mxu0 0.0
        %983 = vmatprep.subr.mxu0 0.0
        %984 = vmatpush1.msra.mxu0 0.0
        %985 = vmatprep.subr.mxu0 0.0
        %986 = vmatpush1.msra.mxu0 0.0
        %987 = vmatprep.subr.mxu0 0.0
        %988 = vmatpush1.msra.mxu0 0.0
        %989 = vmatprep.subr.mxu0 0.0
        %990 = vmatpush1.msra.mxu0 0.0
        %991 = vmatprep.subr.mxu0 0.0
        %992 = vmatpush1.msra.mxu0 0.0
        %993 = vmatprep.subr.mxu0 0.0
        %994 = vmatpush1.msra.mxu0 0.0
        %995 = vmatprep.mubr.f32.mxu0 0.0
        %996 = vmatmul.mubr.f32.gmra.mrb[0].mxu0 %v923
        %v997 = vpop.f32.mrb[0].mxu0
        %v998 = vadd.f32 0.0, %v997
        %v999 = vpop.f32.mrb[0].mxu0
        %v1000 = vadd.f32 0.0, %v999
        %1001 = vdwg.mxu0
        %v1002 = vadd.f32 %v905, %v998
        %v1003 = vadd.f32 %v906, %v1000
        %1004 = vrot.lane.b32.xlu0 %v306, 112
        %v1005 = vpop.permute.xlu0 %1004
        %1006 = vrot.lane.b32.xlu0 %v341, 112
        %v1007 = vpop.permute.xlu0 %1006
        %vm1008 = vcmp.lt.s32.totalorder %v310, 112
        %v1009 = vsel %vm1008, %v1005, %v1007
        %v1010 = vsel %vm1008, %v1007, %v1005
        %v1011 = vsel %vm330, 1, 0
        %v1012 = vsel %vm331, 1, 0
        %vm1013 = vcmp.eq.s32.totalorder %v1011, 1
        %vm1014 = vcmp.eq.s32.totalorder %v1012, 1
        %v1015 = vsel %vm1013, %v1009, 0.0
        %v1016 = vsel %vm1014, %v1010, 0.0
        %s1017 = scalar_lea.vmem %s1, 28
        %v1018 = vld [vmem:[%s1017] sm:$0xf]
        %v1020 = vsel %vm372, %v1018, 0
        %v1023 = vsel %vm376, %v1015, 0
        %v1026 = vsel %vm376, %v1016, 0
        %1028 = vmatprep.subr.mxu0 %v1026
        %1029 = vmatpush1.msra.mxu0 %v1023
        %1030 = vmatprep.subr.mxu0 0.0
        %1031 = vmatpush1.msra.mxu0 0.0
        %1032 = vmatprep.subr.mxu0 0.0
        %1033 = vmatpush1.msra.mxu0 0.0
        %1034 = vmatprep.subr.mxu0 0.0
        %1035 = vmatpush1.msra.mxu0 0.0
        %1036 = vmatprep.subr.mxu0 0.0
        %1037 = vmatpush1.msra.mxu0 0.0
        %1038 = vmatprep.subr.mxu0 0.0
        %1039 = vmatpush1.msra.mxu0 0.0
        %1040 = vmatprep.subr.mxu0 0.0
        %1041 = vmatpush1.msra.mxu0 0.0
        %1042 = vmatprep.subr.mxu0 0.0
        %1043 = vmatpush1.msra.mxu0 0.0
        %1044 = vmatprep.subr.mxu0 0.0
        %1045 = vmatpush1.msra.mxu0 0.0
        %1046 = vmatprep.subr.mxu0 0.0
        %1047 = vmatpush1.msra.mxu0 0.0
        %1048 = vmatprep.subr.mxu0 0.0
        %1049 = vmatpush1.msra.mxu0 0.0
        %1050 = vmatprep.subr.mxu0 0.0
        %1051 = vmatpush1.msra.mxu0 0.0
        %1052 = vmatprep.subr.mxu0 0.0
        %1053 = vmatpush1.msra.mxu0 0.0
        %1054 = vmatprep.subr.mxu0 0.0
        %1055 = vmatpush1.msra.mxu0 0.0
        %1056 = vmatprep.subr.mxu0 0.0
        %1057 = vmatpush1.msra.mxu0 0.0
        %1058 = vmatprep.subr.mxu0 0.0
        %1059 = vmatpush1.msra.mxu0 0.0
        %1060 = vmatprep.subr.mxu0 0.0
        %1061 = vmatpush1.msra.mxu0 0.0
        %1062 = vmatprep.subr.mxu0 0.0
        %1063 = vmatpush1.msra.mxu0 0.0
        %1064 = vmatprep.subr.mxu0 0.0
        %1065 = vmatpush1.msra.mxu0 0.0
        %1066 = vmatprep.subr.mxu0 0.0
        %1067 = vmatpush1.msra.mxu0 0.0
        %1068 = vmatprep.subr.mxu0 0.0
        %1069 = vmatpush1.msra.mxu0 0.0
        %1070 = vmatprep.subr.mxu0 0.0
        %1071 = vmatpush1.msra.mxu0 0.0
        %1072 = vmatprep.subr.mxu0 0.0
        %1073 = vmatpush1.msra.mxu0 0.0
        %1074 = vmatprep.subr.mxu0 0.0
        %1075 = vmatpush1.msra.mxu0 0.0
        %1076 = vmatprep.subr.mxu0 0.0
        %1077 = vmatpush1.msra.mxu0 0.0
        %1078 = vmatprep.subr.mxu0 0.0
        %1079 = vmatpush1.msra.mxu0 0.0
        %1080 = vmatprep.subr.mxu0 0.0
        %1081 = vmatpush1.msra.mxu0 0.0
        %1082 = vmatprep.subr.mxu0 0.0
        %1083 = vmatpush1.msra.mxu0 0.0
        %1084 = vmatprep.subr.mxu0 0.0
        %1085 = vmatpush1.msra.mxu0 0.0
        %1086 = vmatprep.subr.mxu0 0.0
        %1087 = vmatpush1.msra.mxu0 0.0
        %1088 = vmatprep.subr.mxu0 0.0
        %1089 = vmatpush1.msra.mxu0 0.0
        %1090 = vmatprep.subr.mxu0 0.0
        %1091 = vmatpush1.msra.mxu0 0.0
        %1092 = vmatprep.mubr.f32.mxu0 0.0
        %1093 = vmatmul.mubr.f32.gmra.mrb[0].mxu0 %v1020
        %v1094 = vpop.f32.mrb[0].mxu0
        %v1095 = vadd.f32 0.0, %v1094
        %v1096 = vpop.f32.mrb[0].mxu0
        %v1097 = vadd.f32 0.0, %v1096
        %1098 = vdwg.mxu0
        %v1099 = vadd.f32 %v1002, %v1095
        %v1100 = vadd.f32 %v1003, %v1097
        %1101 = vrot.lane.b32.xlu0 %v306, 111
        %v1102 = vpop.permute.xlu0 %1101
        %1103 = vrot.lane.b32.xlu0 %v341, 111
        %v1104 = vpop.permute.xlu0 %1103
        %vm1105 = vcmp.lt.s32.totalorder %v310, 111
        %v1106 = vsel %vm1105, %v1102, %v1104
        %v1107 = vsel %vm1105, %v1104, %v1102
        %v1108 = vsel %vm338, 1, 0
        %v1109 = vsel %vm339, 1, 0
        %vm1110 = vcmp.eq.s32.totalorder %v1108, 1
        %vm1111 = vcmp.eq.s32.totalorder %v1109, 1
        %v1112 = vsel %vm1110, %v1106, 0.0
        %v1113 = vsel %vm1111, %v1107, 0.0
        %s1114 = scalar_lea.vmem %s1, 32
        %v1115 = vld [vmem:[%s1114] sm:$0xf]
        %v1117 = vsel %vm372, %v1115, 0
        %v1120 = vsel %vm376, %v1112, 0
        %v1123 = vsel %vm376, %v1113, 0
        %1125 = vmatprep.subr.mxu0 %v1123
        %1126 = vmatpush1.msra.mxu0 %v1120
        %1127 = vmatprep.subr.mxu0 0.0
        %1128 = vmatpush1.msra.mxu0 0.0
        %1129 = vmatprep.subr.mxu0 0.0
        %1130 = vmatpush1.msra.mxu0 0.0
        %1131 = vmatprep.subr.mxu0 0.0
        %1132 = vmatpush1.msra.mxu0 0.0
        %1133 = vmatprep.subr.mxu0 0.0
        %1134 = vmatpush1.msra.mxu0 0.0
        %1135 = vmatprep.subr.mxu0 0.0
        %1136 = vmatpush1.msra.mxu0 0.0
        %1137 = vmatprep.subr.mxu0 0.0
        %1138 = vmatpush1.msra.mxu0 0.0
        %1139 = vmatprep.subr.mxu0 0.0
        %1140 = vmatpush1.msra.mxu0 0.0
        %1141 = vmatprep.subr.mxu0 0.0
        %1142 = vmatpush1.msra.mxu0 0.0
        %1143 = vmatprep.subr.mxu0 0.0
        %1144 = vmatpush1.msra.mxu0 0.0
        %1145 = vmatprep.subr.mxu0 0.0
        %1146 = vmatpush1.msra.mxu0 0.0
        %1147 = vmatprep.subr.mxu0 0.0
        %1148 = vmatpush1.msra.mxu0 0.0
        %1149 = vmatprep.subr.mxu0 0.0
        %1150 = vmatpush1.msra.mxu0 0.0
        %1151 = vmatprep.subr.mxu0 0.0
        %1152 = vmatpush1.msra.mxu0 0.0
        %1153 = vmatprep.subr.mxu0 0.0
        %1154 = vmatpush1.msra.mxu0 0.0
        %1155 = vmatprep.subr.mxu0 0.0
        %1156 = vmatpush1.msra.mxu0 0.0
        %1157 = vmatprep.subr.mxu0 0.0
        %1158 = vmatpush1.msra.mxu0 0.0
        %1159 = vmatprep.subr.mxu0 0.0
        %1160 = vmatpush1.msra.mxu0 0.0
        %1161 = vmatprep.subr.mxu0 0.0
        %1162 = vmatpush1.msra.mxu0 0.0
        %1163 = vmatprep.subr.mxu0 0.0
        %1164 = vmatpush1.msra.mxu0 0.0
        %1165 = vmatprep.subr.mxu0 0.0
        %1166 = vmatpush1.msra.mxu0 0.0
        %1167 = vmatprep.subr.mxu0 0.0
        %1168 = vmatpush1.msra.mxu0 0.0
        %1169 = vmatprep.subr.mxu0 0.0
        %1170 = vmatpush1.msra.mxu0 0.0
        %1171 = vmatprep.subr.mxu0 0.0
        %1172 = vmatpush1.msra.mxu0 0.0
        %1173 = vmatprep.subr.mxu0 0.0
        %1174 = vmatpush1.msra.mxu0 0.0
        %1175 = vmatprep.subr.mxu0 0.0
        %1176 = vmatpush1.msra.mxu0 0.0
        %1177 = vmatprep.subr.mxu0 0.0
        %1178 = vmatpush1.msra.mxu0 0.0
        %1179 = vmatprep.subr.mxu0 0.0
        %1180 = vmatpush1.msra.mxu0 0.0
        %1181 = vmatprep.subr.mxu0 0.0
        %1182 = vmatpush1.msra.mxu0 0.0
        %1183 = vmatprep.subr.mxu0 0.0
        %1184 = vmatpush1.msra.mxu0 0.0
        %1185 = vmatprep.subr.mxu0 0.0
        %1186 = vmatpush1.msra.mxu0 0.0
        %1187 = vmatprep.subr.mxu0 0.0
        %1188 = vmatpush1.msra.mxu0 0.0
        %1189 = vmatprep.mubr.f32.mxu0 0.0
        %1190 = vmatmul.mubr.f32.gmra.mrb[0].mxu0 %v1117
        %v1191 = vpop.f32.mrb[0].mxu0
        %v1192 = vadd.f32 0.0, %v1191
        %v1193 = vpop.f32.mrb[0].mxu0
        %v1194 = vadd.f32 0.0, %v1193
        %1195 = vdwg.mxu0
        %v1196 = vadd.f32 %v1099, %v1192
        %v1197 = vadd.f32 %v1100, %v1194
        %1199 = vset.pattern.permute.xlu0 0
        %1200 = vperm.xlu0 %1199, %v307
        %v1201 = vpop.permute.xlu0 %1200
        %v1203 = vadd.f32 %v1196, %v1201
        %v1204 = vadd.f32 %v1197, %v1201
        %s1205 = sld [smem:[#allocation2 + $0x5]]
        %v1206 = vstv %s1205
        %v1207 = vmul.f32 %v1206, %v1203
        %v1208 = vmul.f32 %v1206, %v1204
        %s1209 = sld [smem:[#allocation2 + $0x4]]
        %v1210 = vstv %s1209
        %v1211 = vadd.f32 %v1207, %v1210
        %v1212 = vadd.f32 %v1208, %v1210
        %v1213 = vmul.f32 %v1211, %v1203
        %v1214 = vmul.f32 %v1212, %v1204
        %s1215 = sld [smem:[#allocation2 + $0x3]]
        %v1216 = vstv %s1215
        %v1217 = vadd.f32 %v1213, %v1216
        %v1218 = vadd.f32 %v1214, %v1216
        %v1219 = vmul.f32 %v1217, %v1203
        %v1220 = vmul.f32 %v1218, %v1204
        %s1221 = sld [smem:[#allocation2 + $0x2]]
        %v1222 = vstv %s1221
        %v1223 = vadd.f32 %v1219, %v1222
        %v1224 = vadd.f32 %v1220, %v1222
        %v1225 = vmul.f32 %v1223, %v1203
        %v1226 = vmul.f32 %v1224, %v1204
        %s1227 = sld [smem:[#allocation2 + $0x1]]
        %v1228 = vstv %s1227
        %v1229 = vadd.f32 %v1225, %v1228
        %v1230 = vadd.f32 %v1226, %v1228
        %v1231 = vmul.f32 %v1229, %v1203
        %v1232 = vmul.f32 %v1230, %v1204
        %s1233 = sld [smem:[#allocation2]]
        %v1234 = vstv %s1233
        %v1235 = vadd.f32 %v1231, %v1234
        %v1236 = vadd.f32 %v1232, %v1234
        %s1237 = sld [smem:[#allocation4 + $0x3]]
        %v1238 = vstv %s1237
        %v1239 = vmul.f32 %v1238, %v1203
        %v1240 = vmul.f32 %v1238, %v1204
        %s1241 = sld [smem:[#allocation4 + $0x2]]
        %v1242 = vstv %s1241
        %v1243 = vadd.f32 %v1239, %v1242
        %v1244 = vadd.f32 %v1240, %v1242
        %v1245 = vmul.f32 %v1243, %v1203
        %v1246 = vmul.f32 %v1244, %v1204
        %s1247 = sld [smem:[#allocation4 + $0x1]]
        %v1248 = vstv %s1247
        %v1249 = vadd.f32 %v1245, %v1248
        %v1250 = vadd.f32 %v1246, %v1248
        %v1251 = vmul.f32 %v1249, %v1203
        %v1252 = vmul.f32 %v1250, %v1204
        %s1253 = sld [smem:[#allocation4]]
        %v1254 = vstv %s1253
        %v1255 = vadd.f32 %v1251, %v1254
        %v1256 = vadd.f32 %v1252, %v1254
        %v1257 = vmul.f32 %v1255, %v1203
        %v1258 = vmul.f32 %v1256, %v1204
        %v1259 = vand.u32 2147483647, %v1257
        %v1260 = vand.u32 2147483647, %v1258
        %v1261 = vadd.f32 %v1259, 1.0
        %v1262 = vadd.f32 %v1260, 1.0
        %v1263 = vrcp.pop %v1261
        %v1264 = vrcp.pop %v1262
        %v1265 = vmul.f32 %v1235, %v1263
        %v1266 = vmul.f32 %v1236, %v1264
        %1267 = vrot.lane.b32.xlu0 %v1265, 17
        %v1268 = vpop.permute.xlu0 %1267
        %1269 = vrot.lane.b32.xlu0 %v1266, 17
        %v1270 = vpop.permute.xlu0 %1269
        %v1271 = vsel %vm347, %v1268, %v1270
        %v1272 = vsel %vm347, %v1270, %v1268
        %v1273 = vsel %vm352, %v1272, 0.0
        %v1274 = vsel %vm353, %v1271, 0.0
        %v1275 = vld [vmem:[%s3] sm:$0xf]
        %1276 = vrot.lane.b32.xlu0 %v1265, 16
        %v1277 = vpop.permute.xlu0 %1276
        %1278 = vrot.lane.b32.xlu0 %v1266, 16
        %v1279 = vpop.permute.xlu0 %1278
        %v1280 = vsel %vm361, %v1277, %v1279
        %v1281 = vsel %vm361, %v1279, %v1277
        %v1282 = vsel %vm366, %v1281, 0.0
        %v1283 = vsel %vm367, %v1280, 0.0
        %s1284 = scalar_lea.vmem %s3, 4
        %v1285 = vld [vmem:[%s1284] sm:$0xf]
        %v1287 = vsel %vm372, %v1285, 0
        %v1290 = vsel %vm376, %v1282, 0
        %v1293 = vsel %vm376, %v1283, 0
        %1295 = vmatprep.subr.mxu0 %v1293
        %1296 = vmatpush1.msra.mxu0 %v1290
        %1297 = vmatprep.subr.mxu0 0.0
        %1298 = vmatpush1.msra.mxu0 0.0
        %1299 = vmatprep.subr.mxu0 0.0
        %1300 = vmatpush1.msra.mxu0 0.0
        %1301 = vmatprep.subr.mxu0 0.0
        %1302 = vmatpush1.msra.mxu0 0.0
        %1303 = vmatprep.subr.mxu0 0.0
        %1304 = vmatpush1.msra.mxu0 0.0
        %1305 = vmatprep.subr.mxu0 0.0
        %1306 = vmatpush1.msra.mxu0 0.0
        %1307 = vmatprep.subr.mxu0 0.0
        %1308 = vmatpush1.msra.mxu0 0.0
        %1309 = vmatprep.subr.mxu0 0.0
        %1310 = vmatpush1.msra.mxu0 0.0
        %1311 = vmatprep.subr.mxu0 0.0
        %1312 = vmatpush1.msra.mxu0 0.0
        %1313 = vmatprep.subr.mxu0 0.0
        %1314 = vmatpush1.msra.mxu0 0.0
        %1315 = vmatprep.subr.mxu0 0.0
        %1316 = vmatpush1.msra.mxu0 0.0
        %1317 = vmatprep.subr.mxu0 0.0
        %1318 = vmatpush1.msra.mxu0 0.0
        %1319 = vmatprep.subr.mxu0 0.0
        %1320 = vmatpush1.msra.mxu0 0.0
        %1321 = vmatprep.subr.mxu0 0.0
        %1322 = vmatpush1.msra.mxu0 0.0
        %1323 = vmatprep.subr.mxu0 0.0
        %1324 = vmatpush1.msra.mxu0 0.0
        %1325 = vmatprep.subr.mxu0 0.0
        %1326 = vmatpush1.msra.mxu0 0.0
        %1327 = vmatprep.subr.mxu0 0.0
        %1328 = vmatpush1.msra.mxu0 0.0
        %1329 = vmatprep.subr.mxu0 0.0
        %1330 = vmatpush1.msra.mxu0 0.0
        %1331 = vmatprep.subr.mxu0 0.0
        %1332 = vmatpush1.msra.mxu0 0.0
        %1333 = vmatprep.subr.mxu0 0.0
        %1334 = vmatpush1.msra.mxu0 0.0
        %1335 = vmatprep.subr.mxu0 0.0
        %1336 = vmatpush1.msra.mxu0 0.0
        %1337 = vmatprep.subr.mxu0 0.0
        %1338 = vmatpush1.msra.mxu0 0.0
        %1339 = vmatprep.subr.mxu0 0.0
        %1340 = vmatpush1.msra.mxu0 0.0
        %1341 = vmatprep.subr.mxu0 0.0
        %1342 = vmatpush1.msra.mxu0 0.0
        %1343 = vmatprep.subr.mxu0 0.0
        %1344 = vmatpush1.msra.mxu0 0.0
        %1345 = vmatprep.subr.mxu0 0.0
        %1346 = vmatpush1.msra.mxu0 0.0
        %1347 = vmatprep.subr.mxu0 0.0
        %1348 = vmatpush1.msra.mxu0 0.0
        %1349 = vmatprep.subr.mxu0 0.0
        %1350 = vmatpush1.msra.mxu0 0.0
        %1351 = vmatprep.subr.mxu0 0.0
        %1352 = vmatpush1.msra.mxu0 0.0
        %1353 = vmatprep.subr.mxu0 0.0
        %1354 = vmatpush1.msra.mxu0 0.0
        %1355 = vmatprep.subr.mxu0 0.0
        %1356 = vmatpush1.msra.mxu0 0.0
        %1357 = vmatprep.subr.mxu0 0.0
        %1358 = vmatpush1.msra.mxu0 0.0
        %1359 = vmatprep.mubr.f32.mxu0 0.0
        %1360 = vmatmul.mubr.f32.gmra.mrb[0].mxu0 %v1287
        %v1361 = vpop.f32.mrb[0].mxu0
        %v1362 = vadd.f32 0.0, %v1361
        %v1363 = vpop.f32.mrb[0].mxu0
        %v1364 = vadd.f32 0.0, %v1363
        %1365 = vdwg.mxu0
        %v1367 = vsel %vm372, %v1275, 0
        %v1370 = vsel %vm376, %v1273, 0
        %v1373 = vsel %vm376, %v1274, 0
        %1375 = vmatprep.subr.mxu0 %v1373
        %1376 = vmatpush1.msra.mxu0 %v1370
        %1377 = vmatprep.subr.mxu0 0.0
        %1378 = vmatpush1.msra.mxu0 0.0
        %1379 = vmatprep.subr.mxu0 0.0
        %1380 = vmatpush1.msra.mxu0 0.0
        %1381 = vmatprep.subr.mxu0 0.0
        %1382 = vmatpush1.msra.mxu0 0.0
        %1383 = vmatprep.subr.mxu0 0.0
        %1384 = vmatpush1.msra.mxu0 0.0
        %1385 = vmatprep.subr.mxu0 0.0
        %1386 = vmatpush1.msra.mxu0 0.0
        %1387 = vmatprep.subr.mxu0 0.0
        %1388 = vmatpush1.msra.mxu0 0.0
        %1389 = vmatprep.subr.mxu0 0.0
        %1390 = vmatpush1.msra.mxu0 0.0
        %1391 = vmatprep.subr.mxu0 0.0
        %1392 = vmatpush1.msra.mxu0 0.0
        %1393 = vmatprep.subr.mxu0 0.0
        %1394 = vmatpush1.msra.mxu0 0.0
        %1395 = vmatprep.subr.mxu0 0.0
        %1396 = vmatpush1.msra.mxu0 0.0
        %1397 = vmatprep.subr.mxu0 0.0
        %1398 = vmatpush1.msra.mxu0 0.0
        %1399 = vmatprep.subr.mxu0 0.0
        %1400 = vmatpush1.msra.mxu0 0.0
        %1401 = vmatprep.subr.mxu0 0.0
        %1402 = vmatpush1.msra.mxu0 0.0
        %1403 = vmatprep.subr.mxu0 0.0
        %1404 = vmatpush1.msra.mxu0 0.0
        %1405 = vmatprep.subr.mxu0 0.0
        %1406 = vmatpush1.msra.mxu0 0.0
        %1407 = vmatprep.subr.mxu0 0.0
        %1408 = vmatpush1.msra.mxu0 0.0
        %1409 = vmatprep.subr.mxu0 0.0
        %1410 = vmatpush1.msra.mxu0 0.0
        %1411 = vmatprep.subr.mxu0 0.0
        %1412 = vmatpush1.msra.mxu0 0.0
        %1413 = vmatprep.subr.mxu0 0.0
        %1414 = vmatpush1.msra.mxu0 0.0
        %1415 = vmatprep.subr.mxu0 0.0
        %1416 = vmatpush1.msra.mxu0 0.0
        %1417 = vmatprep.subr.mxu0 0.0
        %1418 = vmatpush1.msra.mxu0 0.0
        %1419 = vmatprep.subr.mxu0 0.0
        %1420 = vmatpush1.msra.mxu0 0.0
        %1421 = vmatprep.subr.mxu0 0.0
        %1422 = vmatpush1.msra.mxu0 0.0
        %1423 = vmatprep.subr.mxu0 0.0
        %1424 = vmatpush1.msra.mxu0 0.0
        %1425 = vmatprep.subr.mxu0 0.0
        %1426 = vmatpush1.msra.mxu0 0.0
        %1427 = vmatprep.subr.mxu0 0.0
        %1428 = vmatpush1.msra.mxu0 0.0
        %1429 = vmatprep.subr.mxu0 0.0
        %1430 = vmatpush1.msra.mxu0 0.0
        %1431 = vmatprep.subr.mxu0 0.0
        %1432 = vmatpush1.msra.mxu0 0.0
        %1433 = vmatprep.subr.mxu0 0.0
        %1434 = vmatpush1.msra.mxu0 0.0
        %1435 = vmatprep.subr.mxu0 0.0
        %1436 = vmatpush1.msra.mxu0 0.0
        %1437 = vmatprep.subr.mxu0 0.0
        %1438 = vmatpush1.msra.mxu0 0.0
        %1439 = vmatprep.mubr.f32.mxu0 0.0
        %1440 = vmatmul.mubr.f32.gmra.mrb[0].mxu0 %v1367
        %v1441 = vpop.f32.mrb[0].mxu0
        %v1442 = vadd.f32 %v1362, %v1441
        %v1443 = vpop.f32.mrb[0].mxu0
        %v1444 = vadd.f32 %v1364, %v1443
        %1445 = vdwg.mxu0
        %1446 = vrot.lane.b32.xlu0 %v1265, 15
        %v1447 = vpop.permute.xlu0 %1446
        %1448 = vrot.lane.b32.xlu0 %v1266, 15
        %v1449 = vpop.permute.xlu0 %1448
        %v1450 = vsel %vm538, %v1447, %v1449
        %v1451 = vsel %vm538, %v1449, %v1447
        %v1452 = vsel %vm543, %v1451, 0.0
        %v1453 = vsel %vm544, %v1450, 0.0
        %s1454 = scalar_lea.vmem %s3, 8
        %v1455 = vld [vmem:[%s1454] sm:$0xf]
        %v1457 = vsel %vm372, %v1455, 0
        %v1460 = vsel %vm376, %v1452, 0
        %v1463 = vsel %vm376, %v1453, 0
        %1465 = vmatprep.subr.mxu0 %v1463
        %1466 = vmatpush1.msra.mxu0 %v1460
        %1467 = vmatprep.subr.mxu0 0.0
        %1468 = vmatpush1.msra.mxu0 0.0
        %1469 = vmatprep.subr.mxu0 0.0
        %1470 = vmatpush1.msra.mxu0 0.0
        %1471 = vmatprep.subr.mxu0 0.0
        %1472 = vmatpush1.msra.mxu0 0.0
        %1473 = vmatprep.subr.mxu0 0.0
        %1474 = vmatpush1.msra.mxu0 0.0
        %1475 = vmatprep.subr.mxu0 0.0
        %1476 = vmatpush1.msra.mxu0 0.0
        %1477 = vmatprep.subr.mxu0 0.0
        %1478 = vmatpush1.msra.mxu0 0.0
        %1479 = vmatprep.subr.mxu0 0.0
        %1480 = vmatpush1.msra.mxu0 0.0
        %1481 = vmatprep.subr.mxu0 0.0
        %1482 = vmatpush1.msra.mxu0 0.0
        %1483 = vmatprep.subr.mxu0 0.0
        %1484 = vmatpush1.msra.mxu0 0.0
        %1485 = vmatprep.subr.mxu0 0.0
        %1486 = vmatpush1.msra.mxu0 0.0
        %1487 = vmatprep.subr.mxu0 0.0
        %1488 = vmatpush1.msra.mxu0 0.0
        %1489 = vmatprep.subr.mxu0 0.0
        %1490 = vmatpush1.msra.mxu0 0.0
        %1491 = vmatprep.subr.mxu0 0.0
        %1492 = vmatpush1.msra.mxu0 0.0
        %1493 = vmatprep.subr.mxu0 0.0
        %1494 = vmatpush1.msra.mxu0 0.0
        %1495 = vmatprep.subr.mxu0 0.0
        %1496 = vmatpush1.msra.mxu0 0.0
        %1497 = vmatprep.subr.mxu0 0.0
        %1498 = vmatpush1.msra.mxu0 0.0
        %1499 = vmatprep.subr.mxu0 0.0
        %1500 = vmatpush1.msra.mxu0 0.0
        %1501 = vmatprep.subr.mxu0 0.0
        %1502 = vmatpush1.msra.mxu0 0.0
        %1503 = vmatprep.subr.mxu0 0.0
        %1504 = vmatpush1.msra.mxu0 0.0
        %1505 = vmatprep.subr.mxu0 0.0
        %1506 = vmatpush1.msra.mxu0 0.0
        %1507 = vmatprep.subr.mxu0 0.0
        %1508 = vmatpush1.msra.mxu0 0.0
        %1509 = vmatprep.subr.mxu0 0.0
        %1510 = vmatpush1.msra.mxu0 0.0
        %1511 = vmatprep.subr.mxu0 0.0
        %1512 = vmatpush1.msra.mxu0 0.0
        %1513 = vmatprep.subr.mxu0 0.0
        %1514 = vmatpush1.msra.mxu0 0.0
        %1515 = vmatprep.subr.mxu0 0.0
        %1516 = vmatpush1.msra.mxu0 0.0
        %1517 = vmatprep.subr.mxu0 0.0
        %1518 = vmatpush1.msra.mxu0 0.0
        %1519 = vmatprep.subr.mxu0 0.0
        %1520 = vmatpush1.msra.mxu0 0.0
        %1521 = vmatprep.subr.mxu0 0.0
        %1522 = vmatpush1.msra.mxu0 0.0
        %1523 = vmatprep.subr.mxu0 0.0
        %1524 = vmatpush1.msra.mxu0 0.0
        %1525 = vmatprep.subr.mxu0 0.0
        %1526 = vmatpush1.msra.mxu0 0.0
        %1527 = vmatprep.subr.mxu0 0.0
        %1528 = vmatpush1.msra.mxu0 0.0
        %1529 = vmatprep.mubr.f32.mxu0 0.0
        %1530 = vmatmul.mubr.f32.gmra.mrb[0].mxu0 %v1457
        %v1531 = vpop.f32.mrb[0].mxu0
        %v1532 = vadd.f32 0.0, %v1531
        %v1533 = vpop.f32.mrb[0].mxu0
        %v1534 = vadd.f32 0.0, %v1533
        %1535 = vdwg.mxu0
        %v1536 = vadd.f32 %v1442, %v1532
        %v1537 = vadd.f32 %v1444, %v1534
        %1538 = vrot.lane.b32.xlu0 %v1265, 1
        %v1539 = vpop.permute.xlu0 %1538
        %1540 = vrot.lane.b32.xlu0 %v1266, 1
        %v1541 = vpop.permute.xlu0 %1540
        %v1542 = vsel %vm635, %v1539, %v1541
        %v1543 = vsel %vm635, %v1541, %v1539
        %v1544 = vsel %vm640, %v1543, 0.0
        %v1545 = vsel %vm641, %v1542, 0.0
        %s1546 = scalar_lea.vmem %s3, 12
        %v1547 = vld [vmem:[%s1546] sm:$0xf]
        %v1549 = vsel %vm372, %v1547, 0
        %v1552 = vsel %vm376, %v1544, 0
        %v1555 = vsel %vm376, %v1545, 0
        %1557 = vmatprep.subr.mxu0 %v1555
        %1558 = vmatpush1.msra.mxu0 %v1552
        %1559 = vmatprep.subr.mxu0 0.0
        %1560 = vmatpush1.msra.mxu0 0.0
        %1561 = vmatprep.subr.mxu0 0.0
        %1562 = vmatpush1.msra.mxu0 0.0
        %1563 = vmatprep.subr.mxu0 0.0
        %1564 = vmatpush1.msra.mxu0 0.0
        %1565 = vmatprep.subr.mxu0 0.0
        %1566 = vmatpush1.msra.mxu0 0.0
        %1567 = vmatprep.subr.mxu0 0.0
        %1568 = vmatpush1.msra.mxu0 0.0
        %1569 = vmatprep.subr.mxu0 0.0
        %1570 = vmatpush1.msra.mxu0 0.0
        %1571 = vmatprep.subr.mxu0 0.0
        %1572 = vmatpush1.msra.mxu0 0.0
        %1573 = vmatprep.subr.mxu0 0.0
        %1574 = vmatpush1.msra.mxu0 0.0
        %1575 = vmatprep.subr.mxu0 0.0
        %1576 = vmatpush1.msra.mxu0 0.0
        %1577 = vmatprep.subr.mxu0 0.0
        %1578 = vmatpush1.msra.mxu0 0.0
        %1579 = vmatprep.subr.mxu0 0.0
        %1580 = vmatpush1.msra.mxu0 0.0
        %1581 = vmatprep.subr.mxu0 0.0
        %1582 = vmatpush1.msra.mxu0 0.0
        %1583 = vmatprep.subr.mxu0 0.0
        %1584 = vmatpush1.msra.mxu0 0.0
        %1585 = vmatprep.subr.mxu0 0.0
        %1586 = vmatpush1.msra.mxu0 0.0
        %1587 = vmatprep.subr.mxu0 0.0
        %1588 = vmatpush1.msra.mxu0 0.0
        %1589 = vmatprep.subr.mxu0 0.0
        %1590 = vmatpush1.msra.mxu0 0.0
        %1591 = vmatprep.subr.mxu0 0.0
        %1592 = vmatpush1.msra.mxu0 0.0
        %1593 = vmatprep.subr.mxu0 0.0
        %1594 = vmatpush1.msra.mxu0 0.0
        %1595 = vmatprep.subr.mxu0 0.0
        %1596 = vmatpush1.msra.mxu0 0.0
        %1597 = vmatprep.subr.mxu0 0.0
        %1598 = vmatpush1.msra.mxu0 0.0
        %1599 = vmatprep.subr.mxu0 0.0
        %1600 = vmatpush1.msra.mxu0 0.0
        %1601 = vmatprep.subr.mxu0 0.0
        %1602 = vmatpush1.msra.mxu0 0.0
        %1603 = vmatprep.subr.mxu0 0.0
        %1604 = vmatpush1.msra.mxu0 0.0
        %1605 = vmatprep.subr.mxu0 0.0
        %1606 = vmatpush1.msra.mxu0 0.0
        %1607 = vmatprep.subr.mxu0 0.0
        %1608 = vmatpush1.msra.mxu0 0.0
        %1609 = vmatprep.subr.mxu0 0.0
        %1610 = vmatpush1.msra.mxu0 0.0
        %1611 = vmatprep.subr.mxu0 0.0
        %1612 = vmatpush1.msra.mxu0 0.0
        %1613 = vmatprep.subr.mxu0 0.0
        %1614 = vmatpush1.msra.mxu0 0.0
        %1615 = vmatprep.subr.mxu0 0.0
        %1616 = vmatpush1.msra.mxu0 0.0
        %1617 = vmatprep.subr.mxu0 0.0
        %1618 = vmatpush1.msra.mxu0 0.0
        %1619 = vmatprep.subr.mxu0 0.0
        %1620 = vmatpush1.msra.mxu0 0.0
        %1621 = vmatprep.mubr.f32.mxu0 0.0
        %1622 = vmatmul.mubr.f32.gmra.mrb[0].mxu0 %v1549
        %v1623 = vpop.f32.mrb[0].mxu0
        %v1624 = vadd.f32 0.0, %v1623
        %v1625 = vpop.f32.mrb[0].mxu0
        %v1626 = vadd.f32 0.0, %v1625
        %1627 = vdwg.mxu0
        %v1628 = vadd.f32 %v1536, %v1624
        %v1629 = vadd.f32 %v1537, %v1626
        %s1630 = scalar_lea.vmem %s3, 16
        %v1631 = vld [vmem:[%s1630] sm:$0xf]
        %v1633 = vsel %vm372, %v1631, 0
        %v1636 = vsel %vm376, %v1265, 0
        %v1639 = vsel %vm376, %v1266, 0
        %1641 = vmatprep.subr.mxu0 %v1639
        %1642 = vmatpush1.msra.mxu0 %v1636
        %1643 = vmatprep.subr.mxu0 0.0
        %1644 = vmatpush1.msra.mxu0 0.0
        %1645 = vmatprep.subr.mxu0 0.0
        %1646 = vmatpush1.msra.mxu0 0.0
        %1647 = vmatprep.subr.mxu0 0.0
        %1648 = vmatpush1.msra.mxu0 0.0
        %1649 = vmatprep.subr.mxu0 0.0
        %1650 = vmatpush1.msra.mxu0 0.0
        %1651 = vmatprep.subr.mxu0 0.0
        %1652 = vmatpush1.msra.mxu0 0.0
        %1653 = vmatprep.subr.mxu0 0.0
        %1654 = vmatpush1.msra.mxu0 0.0
        %1655 = vmatprep.subr.mxu0 0.0
        %1656 = vmatpush1.msra.mxu0 0.0
        %1657 = vmatprep.subr.mxu0 0.0
        %1658 = vmatpush1.msra.mxu0 0.0
        %1659 = vmatprep.subr.mxu0 0.0
        %1660 = vmatpush1.msra.mxu0 0.0
        %1661 = vmatprep.subr.mxu0 0.0
        %1662 = vmatpush1.msra.mxu0 0.0
        %1663 = vmatprep.subr.mxu0 0.0
        %1664 = vmatpush1.msra.mxu0 0.0
        %1665 = vmatprep.subr.mxu0 0.0
        %1666 = vmatpush1.msra.mxu0 0.0
        %1667 = vmatprep.subr.mxu0 0.0
        %1668 = vmatpush1.msra.mxu0 0.0
        %1669 = vmatprep.subr.mxu0 0.0
        %1670 = vmatpush1.msra.mxu0 0.0
        %1671 = vmatprep.subr.mxu0 0.0
        %1672 = vmatpush1.msra.mxu0 0.0
        %1673 = vmatprep.subr.mxu0 0.0
        %1674 = vmatpush1.msra.mxu0 0.0
        %1675 = vmatprep.subr.mxu0 0.0
        %1676 = vmatpush1.msra.mxu0 0.0
        %1677 = vmatprep.subr.mxu0 0.0
        %1678 = vmatpush1.msra.mxu0 0.0
        %1679 = vmatprep.subr.mxu0 0.0
        %1680 = vmatpush1.msra.mxu0 0.0
        %1681 = vmatprep.subr.mxu0 0.0
        %1682 = vmatpush1.msra.mxu0 0.0
        %1683 = vmatprep.subr.mxu0 0.0
        %1684 = vmatpush1.msra.mxu0 0.0
        %1685 = vmatprep.subr.mxu0 0.0
        %1686 = vmatpush1.msra.mxu0 0.0
        %1687 = vmatprep.subr.mxu0 0.0
        %1688 = vmatpush1.msra.mxu0 0.0
        %1689 = vmatprep.subr.mxu0 0.0
        %1690 = vmatpush1.msra.mxu0 0.0
        %1691 = vmatprep.subr.mxu0 0.0
        %1692 = vmatpush1.msra.mxu0 0.0
        %1693 = vmatprep.subr.mxu0 0.0
        %1694 = vmatpush1.msra.mxu0 0.0
        %1695 = vmatprep.subr.mxu0 0.0
        %1696 = vmatpush1.msra.mxu0 0.0
        %1697 = vmatprep.subr.mxu0 0.0
        %1698 = vmatpush1.msra.mxu0 0.0
        %1699 = vmatprep.subr.mxu0 0.0
        %1700 = vmatpush1.msra.mxu0 0.0
        %1701 = vmatprep.subr.mxu0 0.0
        %1702 = vmatpush1.msra.mxu0 0.0
        %1703 = vmatprep.subr.mxu0 0.0
        %1704 = vmatpush1.msra.mxu0 0.0
        %1705 = vmatprep.mubr.f32.mxu0 0.0
        %1706 = vmatmul.mubr.f32.gmra.mrb[0].mxu0 %v1633
        %v1707 = vpop.f32.mrb[0].mxu0
        %v1708 = vadd.f32 0.0, %v1707
        %v1709 = vpop.f32.mrb[0].mxu0
        %v1710 = vadd.f32 0.0, %v1709
        %1711 = vdwg.mxu0
        %v1712 = vadd.f32 %v1628, %v1708
        %v1713 = vadd.f32 %v1629, %v1710
        %1714 = vrot.lane.b32.xlu0 %v1265, 127
        %v1715 = vpop.permute.xlu0 %1714
        %1716 = vrot.lane.b32.xlu0 %v1266, 127
        %v1717 = vpop.permute.xlu0 %1716
        %v1718 = vsel %vm814, %v1715, %v1717
        %v1719 = vsel %vm814, %v1717, %v1715
        %v1720 = vsel %vm819, %v1718, 0.0
        %v1721 = vsel %vm820, %v1719, 0.0
        %s1722 = scalar_lea.vmem %s3, 20
        %v1723 = vld [vmem:[%s1722] sm:$0xf]
        %v1725 = vsel %vm372, %v1723, 0
        %v1728 = vsel %vm376, %v1720, 0
        %v1731 = vsel %vm376, %v1721, 0
        %1733 = vmatprep.subr.mxu0 %v1731
        %1734 = vmatpush1.msra.mxu0 %v1728
        %1735 = vmatprep.subr.mxu0 0.0
        %1736 = vmatpush1.msra.mxu0 0.0
        %1737 = vmatprep.subr.mxu0 0.0
        %1738 = vmatpush1.msra.mxu0 0.0
        %1739 = vmatprep.subr.mxu0 0.0
        %1740 = vmatpush1.msra.mxu0 0.0
        %1741 = vmatprep.subr.mxu0 0.0
        %1742 = vmatpush1.msra.mxu0 0.0
        %1743 = vmatprep.subr.mxu0 0.0
        %1744 = vmatpush1.msra.mxu0 0.0
        %1745 = vmatprep.subr.mxu0 0.0
        %1746 = vmatpush1.msra.mxu0 0.0
        %1747 = vmatprep.subr.mxu0 0.0
        %1748 = vmatpush1.msra.mxu0 0.0
        %1749 = vmatprep.subr.mxu0 0.0
        %1750 = vmatpush1.msra.mxu0 0.0
        %1751 = vmatprep.subr.mxu0 0.0
        %1752 = vmatpush1.msra.mxu0 0.0
        %1753 = vmatprep.subr.mxu0 0.0
        %1754 = vmatpush1.msra.mxu0 0.0
        %1755 = vmatprep.subr.mxu0 0.0
        %1756 = vmatpush1.msra.mxu0 0.0
        %1757 = vmatprep.subr.mxu0 0.0
        %1758 = vmatpush1.msra.mxu0 0.0
        %1759 = vmatprep.subr.mxu0 0.0
        %1760 = vmatpush1.msra.mxu0 0.0
        %1761 = vmatprep.subr.mxu0 0.0
        %1762 = vmatpush1.msra.mxu0 0.0
        %1763 = vmatprep.subr.mxu0 0.0
        %1764 = vmatpush1.msra.mxu0 0.0
        %1765 = vmatprep.subr.mxu0 0.0
        %1766 = vmatpush1.msra.mxu0 0.0
        %1767 = vmatprep.subr.mxu0 0.0
        %1768 = vmatpush1.msra.mxu0 0.0
        %1769 = vmatprep.subr.mxu0 0.0
        %1770 = vmatpush1.msra.mxu0 0.0
        %1771 = vmatprep.subr.mxu0 0.0
        %1772 = vmatpush1.msra.mxu0 0.0
        %1773 = vmatprep.subr.mxu0 0.0
        %1774 = vmatpush1.msra.mxu0 0.0
        %1775 = vmatprep.subr.mxu0 0.0
        %1776 = vmatpush1.msra.mxu0 0.0
        %1777 = vmatprep.subr.mxu0 0.0
        %1778 = vmatpush1.msra.mxu0 0.0
        %1779 = vmatprep.subr.mxu0 0.0
        %1780 = vmatpush1.msra.mxu0 0.0
        %1781 = vmatprep.subr.mxu0 0.0
        %1782 = vmatpush1.msra.mxu0 0.0
        %1783 = vmatprep.subr.mxu0 0.0
        %1784 = vmatpush1.msra.mxu0 0.0
        %1785 = vmatprep.subr.mxu0 0.0
        %1786 = vmatpush1.msra.mxu0 0.0
        %1787 = vmatprep.subr.mxu0 0.0
        %1788 = vmatpush1.msra.mxu0 0.0
        %1789 = vmatprep.subr.mxu0 0.0
        %1790 = vmatpush1.msra.mxu0 0.0
        %1791 = vmatprep.subr.mxu0 0.0
        %1792 = vmatpush1.msra.mxu0 0.0
        %1793 = vmatprep.subr.mxu0 0.0
        %1794 = vmatpush1.msra.mxu0 0.0
        %1795 = vmatprep.subr.mxu0 0.0
        %1796 = vmatpush1.msra.mxu0 0.0
        %1797 = vmatprep.mubr.f32.mxu0 0.0
        %1798 = vmatmul.mubr.f32.gmra.mrb[0].mxu0 %v1725
        %v1799 = vpop.f32.mrb[0].mxu0
        %v1800 = vadd.f32 0.0, %v1799
        %v1801 = vpop.f32.mrb[0].mxu0
        %v1802 = vadd.f32 0.0, %v1801
        %1803 = vdwg.mxu0
        %v1804 = vadd.f32 %v1712, %v1800
        %v1805 = vadd.f32 %v1713, %v1802
        %1806 = vrot.lane.b32.xlu0 %v1265, 113
        %v1807 = vpop.permute.xlu0 %1806
        %1808 = vrot.lane.b32.xlu0 %v1266, 113
        %v1809 = vpop.permute.xlu0 %1808
        %v1810 = vsel %vm911, %v1807, %v1809
        %v1811 = vsel %vm911, %v1809, %v1807
        %v1812 = vsel %vm916, %v1810, 0.0
        %v1813 = vsel %vm917, %v1811, 0.0
        %s1814 = scalar_lea.vmem %s3, 24
        %v1815 = vld [vmem:[%s1814] sm:$0xf]
        %v1817 = vsel %vm372, %v1815, 0
        %v1820 = vsel %vm376, %v1812, 0
        %v1823 = vsel %vm376, %v1813, 0
        %1825 = vmatprep.subr.mxu0 %v1823
        %1826 = vmatpush1.msra.mxu0 %v1820
        %1827 = vmatprep.subr.mxu0 0.0
        %1828 = vmatpush1.msra.mxu0 0.0
        %1829 = vmatprep.subr.mxu0 0.0
        %1830 = vmatpush1.msra.mxu0 0.0
        %1831 = vmatprep.subr.mxu0 0.0
        %1832 = vmatpush1.msra.mxu0 0.0
        %1833 = vmatprep.subr.mxu0 0.0
        %1834 = vmatpush1.msra.mxu0 0.0
        %1835 = vmatprep.subr.mxu0 0.0
        %1836 = vmatpush1.msra.mxu0 0.0
        %1837 = vmatprep.subr.mxu0 0.0
        %1838 = vmatpush1.msra.mxu0 0.0
        %1839 = vmatprep.subr.mxu0 0.0
        %1840 = vmatpush1.msra.mxu0 0.0
        %1841 = vmatprep.subr.mxu0 0.0
        %1842 = vmatpush1.msra.mxu0 0.0
        %1843 = vmatprep.subr.mxu0 0.0
        %1844 = vmatpush1.msra.mxu0 0.0
        %1845 = vmatprep.subr.mxu0 0.0
        %1846 = vmatpush1.msra.mxu0 0.0
        %1847 = vmatprep.subr.mxu0 0.0
        %1848 = vmatpush1.msra.mxu0 0.0
        %1849 = vmatprep.subr.mxu0 0.0
        %1850 = vmatpush1.msra.mxu0 0.0
        %1851 = vmatprep.subr.mxu0 0.0
        %1852 = vmatpush1.msra.mxu0 0.0
        %1853 = vmatprep.subr.mxu0 0.0
        %1854 = vmatpush1.msra.mxu0 0.0
        %1855 = vmatprep.subr.mxu0 0.0
        %1856 = vmatpush1.msra.mxu0 0.0
        %1857 = vmatprep.subr.mxu0 0.0
        %1858 = vmatpush1.msra.mxu0 0.0
        %1859 = vmatprep.subr.mxu0 0.0
        %1860 = vmatpush1.msra.mxu0 0.0
        %1861 = vmatprep.subr.mxu0 0.0
        %1862 = vmatpush1.msra.mxu0 0.0
        %1863 = vmatprep.subr.mxu0 0.0
        %1864 = vmatpush1.msra.mxu0 0.0
        %1865 = vmatprep.subr.mxu0 0.0
        %1866 = vmatpush1.msra.mxu0 0.0
        %1867 = vmatprep.subr.mxu0 0.0
        %1868 = vmatpush1.msra.mxu0 0.0
        %1869 = vmatprep.subr.mxu0 0.0
        %1870 = vmatpush1.msra.mxu0 0.0
        %1871 = vmatprep.subr.mxu0 0.0
        %1872 = vmatpush1.msra.mxu0 0.0
        %1873 = vmatprep.subr.mxu0 0.0
        %1874 = vmatpush1.msra.mxu0 0.0
        %1875 = vmatprep.subr.mxu0 0.0
        %1876 = vmatpush1.msra.mxu0 0.0
        %1877 = vmatprep.subr.mxu0 0.0
        %1878 = vmatpush1.msra.mxu0 0.0
        %1879 = vmatprep.subr.mxu0 0.0
        %1880 = vmatpush1.msra.mxu0 0.0
        %1881 = vmatprep.subr.mxu0 0.0
        %1882 = vmatpush1.msra.mxu0 0.0
        %1883 = vmatprep.subr.mxu0 0.0
        %1884 = vmatpush1.msra.mxu0 0.0
        %1885 = vmatprep.subr.mxu0 0.0
        %1886 = vmatpush1.msra.mxu0 0.0
        %1887 = vmatprep.subr.mxu0 0.0
        %1888 = vmatpush1.msra.mxu0 0.0
        %1889 = vmatprep.mubr.f32.mxu0 0.0
        %1890 = vmatmul.mubr.f32.gmra.mrb[0].mxu0 %v1817
        %v1891 = vpop.f32.mrb[0].mxu0
        %v1892 = vadd.f32 0.0, %v1891
        %v1893 = vpop.f32.mrb[0].mxu0
        %v1894 = vadd.f32 0.0, %v1893
        %1895 = vdwg.mxu0
        %v1896 = vadd.f32 %v1804, %v1892
        %v1897 = vadd.f32 %v1805, %v1894
        %1898 = vrot.lane.b32.xlu0 %v1265, 112
        %v1899 = vpop.permute.xlu0 %1898
        %1900 = vrot.lane.b32.xlu0 %v1266, 112
        %v1901 = vpop.permute.xlu0 %1900
        %v1902 = vsel %vm1008, %v1899, %v1901
        %v1903 = vsel %vm1008, %v1901, %v1899
        %v1904 = vsel %vm1013, %v1902, 0.0
        %v1905 = vsel %vm1014, %v1903, 0.0
        %s1906 = scalar_lea.vmem %s3, 28
        %v1907 = vld [vmem:[%s1906] sm:$0xf]
        %v1909 = vsel %vm372, %v1907, 0
        %v1912 = vsel %vm376, %v1904, 0
        %v1915 = vsel %vm376, %v1905, 0
        %1917 = vmatprep.subr.mxu0 %v1915
        %1918 = vmatpush1.msra.mxu0 %v1912
        %1919 = vmatprep.subr.mxu0 0.0
        %1920 = vmatpush1.msra.mxu0 0.0
        %1921 = vmatprep.subr.mxu0 0.0
        %1922 = vmatpush1.msra.mxu0 0.0
        %1923 = vmatprep.subr.mxu0 0.0
        %1924 = vmatpush1.msra.mxu0 0.0
        %1925 = vmatprep.subr.mxu0 0.0
        %1926 = vmatpush1.msra.mxu0 0.0
        %1927 = vmatprep.subr.mxu0 0.0
        %1928 = vmatpush1.msra.mxu0 0.0
        %1929 = vmatprep.subr.mxu0 0.0
        %1930 = vmatpush1.msra.mxu0 0.0
        %1931 = vmatprep.subr.mxu0 0.0
        %1932 = vmatpush1.msra.mxu0 0.0
        %1933 = vmatprep.subr.mxu0 0.0
        %1934 = vmatpush1.msra.mxu0 0.0
        %1935 = vmatprep.subr.mxu0 0.0
        %1936 = vmatpush1.msra.mxu0 0.0
        %1937 = vmatprep.subr.mxu0 0.0
        %1938 = vmatpush1.msra.mxu0 0.0
        %1939 = vmatprep.subr.mxu0 0.0
        %1940 = vmatpush1.msra.mxu0 0.0
        %1941 = vmatprep.subr.mxu0 0.0
        %1942 = vmatpush1.msra.mxu0 0.0
        %1943 = vmatprep.subr.mxu0 0.0
        %1944 = vmatpush1.msra.mxu0 0.0
        %1945 = vmatprep.subr.mxu0 0.0
        %1946 = vmatpush1.msra.mxu0 0.0
        %1947 = vmatprep.subr.mxu0 0.0
        %1948 = vmatpush1.msra.mxu0 0.0
        %1949 = vmatprep.subr.mxu0 0.0
        %1950 = vmatpush1.msra.mxu0 0.0
        %1951 = vmatprep.subr.mxu0 0.0
        %1952 = vmatpush1.msra.mxu0 0.0
        %1953 = vmatprep.subr.mxu0 0.0
        %1954 = vmatpush1.msra.mxu0 0.0
        %1955 = vmatprep.subr.mxu0 0.0
        %1956 = vmatpush1.msra.mxu0 0.0
        %1957 = vmatprep.subr.mxu0 0.0
        %1958 = vmatpush1.msra.mxu0 0.0
        %1959 = vmatprep.subr.mxu0 0.0
        %1960 = vmatpush1.msra.mxu0 0.0
        %1961 = vmatprep.subr.mxu0 0.0
        %1962 = vmatpush1.msra.mxu0 0.0
        %1963 = vmatprep.subr.mxu0 0.0
        %1964 = vmatpush1.msra.mxu0 0.0
        %1965 = vmatprep.subr.mxu0 0.0
        %1966 = vmatpush1.msra.mxu0 0.0
        %1967 = vmatprep.subr.mxu0 0.0
        %1968 = vmatpush1.msra.mxu0 0.0
        %1969 = vmatprep.subr.mxu0 0.0
        %1970 = vmatpush1.msra.mxu0 0.0
        %1971 = vmatprep.subr.mxu0 0.0
        %1972 = vmatpush1.msra.mxu0 0.0
        %1973 = vmatprep.subr.mxu0 0.0
        %1974 = vmatpush1.msra.mxu0 0.0
        %1975 = vmatprep.subr.mxu0 0.0
        %1976 = vmatpush1.msra.mxu0 0.0
        %1977 = vmatprep.subr.mxu0 0.0
        %1978 = vmatpush1.msra.mxu0 0.0
        %1979 = vmatprep.subr.mxu0 0.0
        %1980 = vmatpush1.msra.mxu0 0.0
        %1981 = vmatprep.mubr.f32.mxu0 0.0
        %1982 = vmatmul.mubr.f32.gmra.mrb[0].mxu0 %v1909
        %v1983 = vpop.f32.mrb[0].mxu0
        %v1984 = vadd.f32 0.0, %v1983
        %v1985 = vpop.f32.mrb[0].mxu0
        %v1986 = vadd.f32 0.0, %v1985
        %1987 = vdwg.mxu0
        %v1988 = vadd.f32 %v1896, %v1984
        %v1989 = vadd.f32 %v1897, %v1986
        %1990 = vrot.lane.b32.xlu0 %v1265, 111
        %v1991 = vpop.permute.xlu0 %1990
        %1992 = vrot.lane.b32.xlu0 %v1266, 111
        %v1993 = vpop.permute.xlu0 %1992
        %v1994 = vsel %vm1105, %v1991, %v1993
        %v1995 = vsel %vm1105, %v1993, %v1991
        %v1996 = vsel %vm1110, %v1994, 0.0
        %v1997 = vsel %vm1111, %v1995, 0.0
        %s1998 = scalar_lea.vmem %s3, 32
        %v1999 = vld [vmem:[%s1998] sm:$0xf]
        %v2001 = vsel %vm372, %v1999, 0
        %v2004 = vsel %vm376, %v1996, 0
        %v2007 = vsel %vm376, %v1997, 0
        %2009 = vmatprep.subr.mxu0 %v2007
        %2010 = vmatpush1.msra.mxu0 %v2004
        %2011 = vmatprep.subr.mxu0 0.0
        %2012 = vmatpush1.msra.mxu0 0.0
        %2013 = vmatprep.subr.mxu0 0.0
        %2014 = vmatpush1.msra.mxu0 0.0
        %2015 = vmatprep.subr.mxu0 0.0
        %2016 = vmatpush1.msra.mxu0 0.0
        %2017 = vmatprep.subr.mxu0 0.0
        %2018 = vmatpush1.msra.mxu0 0.0
        %2019 = vmatprep.subr.mxu0 0.0
        %2020 = vmatpush1.msra.mxu0 0.0
        %2021 = vmatprep.subr.mxu0 0.0
        %2022 = vmatpush1.msra.mxu0 0.0
        %2023 = vmatprep.subr.mxu0 0.0
        %2024 = vmatpush1.msra.mxu0 0.0
        %2025 = vmatprep.subr.mxu0 0.0
        %2026 = vmatpush1.msra.mxu0 0.0
        %2027 = vmatprep.subr.mxu0 0.0
        %2028 = vmatpush1.msra.mxu0 0.0
        %2029 = vmatprep.subr.mxu0 0.0
        %2030 = vmatpush1.msra.mxu0 0.0
        %2031 = vmatprep.subr.mxu0 0.0
        %2032 = vmatpush1.msra.mxu0 0.0
        %2033 = vmatprep.subr.mxu0 0.0
        %2034 = vmatpush1.msra.mxu0 0.0
        %2035 = vmatprep.subr.mxu0 0.0
        %2036 = vmatpush1.msra.mxu0 0.0
        %2037 = vmatprep.subr.mxu0 0.0
        %2038 = vmatpush1.msra.mxu0 0.0
        %2039 = vmatprep.subr.mxu0 0.0
        %2040 = vmatpush1.msra.mxu0 0.0
        %2041 = vmatprep.subr.mxu0 0.0
        %2042 = vmatpush1.msra.mxu0 0.0
        %2043 = vmatprep.subr.mxu0 0.0
        %2044 = vmatpush1.msra.mxu0 0.0
        %2045 = vmatprep.subr.mxu0 0.0
        %2046 = vmatpush1.msra.mxu0 0.0
        %2047 = vmatprep.subr.mxu0 0.0
        %2048 = vmatpush1.msra.mxu0 0.0
        %2049 = vmatprep.subr.mxu0 0.0
        %2050 = vmatpush1.msra.mxu0 0.0
        %2051 = vmatprep.subr.mxu0 0.0
        %2052 = vmatpush1.msra.mxu0 0.0
        %2053 = vmatprep.subr.mxu0 0.0
        %2054 = vmatpush1.msra.mxu0 0.0
        %2055 = vmatprep.subr.mxu0 0.0
        %2056 = vmatpush1.msra.mxu0 0.0
        %2057 = vmatprep.subr.mxu0 0.0
        %2058 = vmatpush1.msra.mxu0 0.0
        %2059 = vmatprep.subr.mxu0 0.0
        %2060 = vmatpush1.msra.mxu0 0.0
        %2061 = vmatprep.subr.mxu0 0.0
        %2062 = vmatpush1.msra.mxu0 0.0
        %2063 = vmatprep.subr.mxu0 0.0
        %2064 = vmatpush1.msra.mxu0 0.0
        %2065 = vmatprep.subr.mxu0 0.0
        %2066 = vmatpush1.msra.mxu0 0.0
        %2067 = vmatprep.subr.mxu0 0.0
        %2068 = vmatpush1.msra.mxu0 0.0
        %2069 = vmatprep.subr.mxu0 0.0
        %2070 = vmatpush1.msra.mxu0 0.0
        %2071 = vmatprep.subr.mxu0 0.0
        %2072 = vmatpush1.msra.mxu0 0.0
        %2073 = vmatprep.mubr.f32.mxu0 0.0
        %2074 = vmatmul.mubr.f32.gmra.mrb[0].mxu0 %v2001
        %v2075 = vpop.f32.mrb[0].mxu0
        %v2076 = vadd.f32 0.0, %v2075
        %v2077 = vpop.f32.mrb[0].mxu0
        %v2078 = vadd.f32 0.0, %v2077
        %2079 = vdwg.mxu0
        %v2080 = vadd.f32 %v1988, %v2076
        %v2081 = vadd.f32 %v1989, %v2078
        %2083 = vset.pattern.permute.xlu0 0
        %2084 = vperm.xlu0 %2083, %v308
        %v2085 = vpop.permute.xlu0 %2084
        %v2087 = vadd.f32 %v2080, %v2085
        %v2088 = vadd.f32 %v2081, %v2085
        %v2089 = vadd.f32 %v2087, %v306
        %v2090 = vadd.f32 %v2088, %v341
        %v2091 = vmul.f32 %v1206, %v2089
        %v2092 = vmul.f32 %v1206, %v2090
        %v2093 = vadd.f32 %v2091, %v1210
        %v2094 = vadd.f32 %v2092, %v1210
        %v2095 = vmul.f32 %v2093, %v2089
        %v2096 = vmul.f32 %v2094, %v2090
        %v2097 = vadd.f32 %v2095, %v1216
        %v2098 = vadd.f32 %v2096, %v1216
        %v2099 = vmul.f32 %v2097, %v2089
        %v2100 = vmul.f32 %v2098, %v2090
        %v2101 = vadd.f32 %v2099, %v1222
        %v2102 = vadd.f32 %v2100, %v1222
        %v2103 = vmul.f32 %v2101, %v2089
        %v2104 = vmul.f32 %v2102, %v2090
        %v2105 = vadd.f32 %v2103, %v1228
        %v2106 = vadd.f32 %v2104, %v1228
        %v2107 = vmul.f32 %v2105, %v2089
        %v2108 = vmul.f32 %v2106, %v2090
        %v2109 = vadd.f32 %v2107, %v1234
        %v2110 = vadd.f32 %v2108, %v1234
        %v2111 = vmul.f32 %v1238, %v2089
        %v2112 = vmul.f32 %v1238, %v2090
        %v2113 = vadd.f32 %v2111, %v1242
        %v2114 = vadd.f32 %v2112, %v1242
        %v2115 = vmul.f32 %v2113, %v2089
        %v2116 = vmul.f32 %v2114, %v2090
        %v2117 = vadd.f32 %v2115, %v1248
        %v2118 = vadd.f32 %v2116, %v1248
        %v2119 = vmul.f32 %v2117, %v2089
        %v2120 = vmul.f32 %v2118, %v2090
        %v2121 = vadd.f32 %v2119, %v1254
        %v2122 = vadd.f32 %v2120, %v1254
        %v2123 = vmul.f32 %v2121, %v2089
        %v2124 = vmul.f32 %v2122, %v2090
        %v2125 = vand.u32 2147483647, %v2123
        %v2126 = vand.u32 2147483647, %v2124
        %v2127 = vadd.f32 %v2125, 1.0
        %v2128 = vadd.f32 %v2126, 1.0
        %v2129 = vrcp.pop %v2127
        %v2130 = vrcp.pop %v2128
        %v2131 = vmul.f32 %v2109, %v2129
        %v2132 = vmul.f32 %v2110, %v2130
        %v2135 = vcombine.low %v2131, %v2132
        %2137 = vst [vmem:[%s305] sm:$0xff] %v2135
        %p2138 = scmp.lt.s32.totalorder %s20, 1
        %s2139 = scalar_select %p2138, %s20, 1
        %s2140 = smul.addr %s2139, 2
        %s2141 = smul.addr %s2140, 4
        %s2142 = scalar_lea.vmem %s7, %s2141
        // Predicated region
        $region57: #{rational_basic_block_forward.1} parent=47 // pred_check
          %p2143 = pneg %p190
        $region58: #{rational_basic_block_forward.1} parent=47 // pred_check_branch
          %2145 = sbr.rel (%p2143) target = $region60
        $region59: #{rational_basic_block_forward.1} parent=47 // pred_region
          _
        $region60: #{rational_basic_block_forward.1} parent=47 // pred_fallthru
          _
      $region48: #{rational_basic_block_forward.1} parent=5 // pred_fallthru
        _
      %p2146 = scmp.le.s32.totalorder 2, %s15
      // Predicated region
      $region61: #{rational_basic_block_forward.1} parent=5 // pred_check
        %p2147 = pneg %p2146
      $region62: #{rational_basic_block_forward.1} parent=5 // pred_check_branch
        %2149 = sbr.rel (%p2147) target = $region64
      $region63: #{rational_basic_block_forward.1} parent=5 // pred_region
        %s2150 = ssub.s32 %s15, 2
        // Predicated region
        $region65: #{rational_basic_block_forward.1} parent=63 // pred_check
          %p2151 = pneg %p196
        $region66: #{rational_basic_block_forward.1} parent=63 // pred_check_branch
          %2153 = sbr.rel (%p2151) target = $region68
        $region67: #{rational_basic_block_forward.1} parent=63 // pred_region
          %p2154 = scmp.lt.s32.totalorder %s21, 1
          %s2155 = scalar_select %p2154, %s21, 1
          %s2156 = smul.addr %s2155, 2
          %s2157 = smul.addr %s2156, 4
          %s2158 = scalar_lea.vmem %s7, %s2157
        $region68: #{rational_basic_block_forward.1} parent=63 // pred_fallthru
          _
      $region64: #{rational_basic_block_forward.1} parent=5 // pred_fallthru
        _
    $region6: #{rational_basic_block_forward.1} parent=1 // loop_footer
      %s19 = sadd.s32 1, %s15
    $region7: #{rational_basic_block_forward.1} parent=1 // loop_footer_branch
      %14 = sbr.rel target = $region3
    $region8: #{rational_basic_block_forward.1} parent=1 // loop_exit
      _
    %2159 = vsyncpa [#allocation3], 1
    %s2160 = scalar_lea.sflag [#allocation3], 1
    %2161 = vsyncpa %s2160, 1
    %2162 = vsyncpa [#allocation5], 1

</llo_original>
